<compile_context>
chip_gen: v7x
topology: tpu7x:2x2x1
jax: 0.10.0
libtpu: 0.0.40
codegen_flags: <defaults>
</compile_context>

<pallas_src>
from functools import partial

import numpy as np
import jax
import jax.numpy as jnp
from jax.experimental import pallas as pl
from jax.experimental.pallas import tpu as pltpu

EPS = 1e-5
LANE = 128
# 75% of the smallest physical VMEM across targets (v7x: 64 MiB / TensorCore).
_VMEM_CAP = 48 * 1024 * 1024


def _round_up(a, b):
    return ((a + b - 1) // b) * b


def _vmem_limit(nbytes):
    """Per-call VMEM request: footprint * 1.5 + 2 MiB headroom, capped."""
    return int(min(max(int(nbytes * 1.5) + (2 << 20), 8 << 20), _VMEM_CAP))


# ----------------------------- kernel helpers -----------------------------

def _bn_relu_math(agg, mask, inv_n, gamma, beta):
    """Training-mode BatchNorm (biased var via E[x^2]-mu^2, masked stats) + ReLU."""
    xm = agg * mask
    mu = jnp.sum(xm, axis=0, keepdims=True) * inv_n
    ex2 = jnp.sum(xm * agg, axis=0, keepdims=True) * inv_n
    var = jnp.maximum(ex2 - mu * mu, 0.0)
    hn = (agg - mu) * jax.lax.rsqrt(var + EPS) * gamma + beta
    return jnp.maximum(hn, 0.0) * mask


def _row_mask(nreal_ref, n_pad):
    n_real = nreal_ref[0, 0]
    rows = jax.lax.broadcasted_iota(jnp.int32, (n_pad, 1), 0)
    return (rows < n_real).astype(jnp.float32)


# ----------------------------- fused kernel (small/medium N) ---------------

def fused_gcn_kernel(nreal_ref, invn_ref, a_ref, x_ref,
                     w1_ref, b1_ref, g1_ref, be1_ref,
                     w2_ref, b2_ref, g2_ref, be2_ref,
                     w3_ref, b3_ref, g3_ref, be3_ref,
                     pool_ref, out_ref):
    n_pad = a_ref.shape[0]
    inv_n = invn_ref[0, 0]
    mask = _row_mask(nreal_ref, n_pad)

    a = a_ref[...]                                    # (N_pad, N_pad) bf16, resident

    def layer(h_bf16, w_ref, b_ref, g_ref, be_ref):
        # aggregation: bf16 x bf16 -> f32 MXU accumulation
        agg = jnp.dot(a, h_bf16, preferred_element_type=jnp.float32)
        # epilogue matmul on the bf16 MXU path, f32 accumulation
        agg = (jnp.dot(agg.astype(jnp.bfloat16), w_ref[...],
                       preferred_element_type=jnp.float32) + b_ref[...])
        return _bn_relu_math(agg, mask, inv_n, g_ref[...], be_ref[...])

    h1 = layer(x_ref[...], w1_ref, b1_ref, g1_ref, be1_ref).astype(jnp.bfloat16)
    h2 = layer(h1, w2_ref, b2_ref, g2_ref, be2_ref).astype(jnp.bfloat16)
    h3 = layer(h2, w3_ref, b3_ref, g3_ref, be3_ref)
    # global_mean_pool as (G, N_pad) @ (N_pad, H_pad): bf16 MXU, f32 acc
    out_ref[...] = jnp.dot(pool_ref[...], h3.astype(jnp.bfloat16),
                           preferred_element_type=jnp.float32)


# ----------------------------- tiled kernels (large N) ---------------------

def _make_gcn_agg_kernel(tk):
    def kernel(a_ref, h_ref, w_ref, b_ref, out_ref, acc_ref):
        k = pl.program_id(1)

        @pl.when(k == 0)
        def _():
            acc_ref[...] = jnp.zeros_like(acc_ref)

        # H is resident (full-extent block); slice the K chunk in-kernel.
        start = pl.multiple_of(k * tk, tk)
        acc_ref[...] += jnp.dot(a_ref[...], h_ref[pl.ds(start, tk), :],
                                preferred_element_type=jnp.float32)

        @pl.when(k == pl.num_programs(1) - 1)
        def _():
            out_ref[...] = (jnp.dot(acc_ref[...].astype(jnp.bfloat16), w_ref[...],
                                    preferred_element_type=jnp.float32)
                            + b_ref[...])
    return kernel


def bn_relu_kernel(nreal_ref, invn_ref, agg_ref, g_ref, be_ref, out_ref):
    mask = _row_mask(nreal_ref, agg_ref.shape[0])
    out_ref[...] = _bn_relu_math(agg_ref[...], mask, invn_ref[0, 0],
                                 g_ref[...], be_ref[...]).astype(out_ref.dtype)


def bn_relu_pool_kernel(nreal_ref, invn_ref, agg_ref, g_ref, be_ref, pool_ref, out_ref):
    mask = _row_mask(nreal_ref, agg_ref.shape[0])
    h = _bn_relu_math(agg_ref[...], mask, invn_ref[0, 0], g_ref[...], be_ref[...])
    out_ref[...] = jnp.dot(pool_ref[...], h.astype(jnp.bfloat16),
                           preferred_element_type=jnp.float32)


# ----------------------------- wrapper -----------------------------

def molecular_gcn_encoder(x, edge_index, batch, params, num_graphs,
                          fuse_max_nodes=2048):
    """x: (N, F_in) f32, edge_index: (2, E) int32, batch: (N,) int32."""
    N, F_in = x.shape
    hidden = params["w1"].shape[1]
    H_pad = _round_up(hidden, LANE)
    F_pad = _round_up(F_in, LANE)

    fused = N <= fuse_max_nodes
    if fused:
        N_pad = _round_up(N, LANE)
    else:
        TM, TK = 512, 256            # v6e/v7x MXU-filling K depth, big row tile
        N_pad = _round_up(N, TM)

    # ---- plain-JAX glue: normalized dense adjacency with self-loops ----
    # TODO(synk): per-graph block-diagonal A (O(sum n_g^2)) via scalar prefetch.
    src, dst = edge_index[0], edge_index[1]
    A = jnp.zeros((N, N), jnp.float32).at[dst, src].set(1.0)     # aggregate src -> dst
    A = A + jnp.eye(N, dtype=jnp.float32)
    deg = jnp.sum(A, axis=1)
    dinv = jax.lax.rsqrt(jnp.maximum(deg, 1e-12))
    a_hat = (dinv[:, None] * A * dinv[None, :]).astype(jnp.bfloat16)   # cast before pad
    a_hat = jnp.pad(a_hat, ((0, N_pad - N), (0, N_pad - N)))

    x_p = jnp.pad(x.astype(jnp.bfloat16), ((0, N_pad - N), (0, F_pad - F_in)))
    n_real = jnp.full((1, 1), N, jnp.int32)
    invn = jnp.full((1, 1), 1.0 / N, jnp.float32)

    onehot = (batch[None, :] == jnp.arange(num_graphs)[:, None]).astype(jnp.float32)
    counts = jnp.maximum(jnp.sum(onehot, axis=1, keepdims=True), 1.0)
    pool = jnp.pad(onehot / counts, ((0, 0), (0, N_pad - N))).astype(jnp.bfloat16)

    def pad2(m, r, c, dtype=jnp.float32):
        return jnp.pad(m, ((0, r - m.shape[0]), (0, c - m.shape[1]))).astype(dtype)

    Ws = [pad2(params["w1"], F_pad, H_pad, jnp.bfloat16),
          pad2(params["w2"], H_pad, H_pad, jnp.bfloat16),
          pad2(params["w3"], H_pad, H_pad, jnp.bfloat16)]
    Bs = [pad2(params[f"b{i}"], 1, H_pad) for i in (1, 2, 3)]
    Gs = [pad2(params[f"g{i}"], 1, H_pad) for i in (1, 2, 3)]
    Bes = [pad2(params[f"be{i}"], 1, H_pad) for i in (1, 2, 3)]

    vmem = pl.BlockSpec(memory_space=pltpu.MemorySpace.VMEM)
    smem = pl.BlockSpec(memory_space=pltpu.MemorySpace.SMEM)

    # ------------------ fused path: one pallas_call, A resident ------------
    if fused:
        footprint = (N_pad * N_pad * 2 + N_pad * F_pad * 2
                     + 8 * N_pad * H_pad * 4
                     + (F_pad + 2 * H_pad) * H_pad * 2
                     + num_graphs * (N_pad * 2 + H_pad * 4))
        flops = (2 * N_pad * N_pad * (F_pad + 2 * H_pad)
                 + 2 * N_pad * H_pad * (F_pad + 2 * H_pad)
                 + 2 * num_graphs * N_pad * H_pad)
        out = pl.pallas_call(
            fused_gcn_kernel,
            out_shape=jax.ShapeDtypeStruct((num_graphs, H_pad), jnp.float32),
            in_specs=[smem, smem] + [vmem] * 15,
            out_specs=vmem,
            compiler_params=pltpu.CompilerParams(
                vmem_limit_bytes=_vmem_limit(footprint)),
            cost_estimate=pl.CostEstimate(flops=flops, transcendentals=3 * H_pad,
                                          bytes_accessed=footprint),
        )(n_real, invn, a_hat, x_p,
          Ws[0], Bs[0], Gs[0], Bes[0],
          Ws[1], Bs[1], Gs[1], Bes[1],
          Ws[2], Bs[2], Gs[2], Bes[2],
          pool)
        return out[:, :hidden]

    # ------------------ tiled path: stream A, H resident --------------------
    grid0 = N_pad // TM          # >= 2 whenever this path triggers (v7x megacore)
    grid1 = N_pad // TK
    agg_kernel = _make_gcn_agg_kernel(TK)

    def gcn_layer(h_bf16, in_pad, w, b):
        flops = 2 * N_pad * N_pad * in_pad + 2 * N_pad * in_pad * H_pad
        bytes_accessed = (N_pad * N_pad * 2 + N_pad * in_pad * 2
                          + in_pad * H_pad * 2 + N_pad * H_pad * 4)
        footprint = (2 * TM * TK * 2 + 2 * N_pad * in_pad * 2
                     + in_pad * H_pad * 2 + TM * in_pad * 4 + 2 * TM * H_pad * 4)
        return pl.pallas_call(
            agg_kernel,
            out_shape=jax.ShapeDtypeStruct((N_pad, H_pad), jnp.float32),
            grid_spec=pltpu.PrefetchScalarGridSpec(
                num_scalar_prefetch=0,
                grid=(grid0, grid1),
                in_specs=[
                    pl.BlockSpec((TM, TK), lambda i, k: (i, k)),          # A tile (streamed)
                    pl.BlockSpec((N_pad, in_pad), lambda i, k: (0, 0)),   # H (resident)
                    pl.BlockSpec((in_pad, H_pad), lambda i, k: (0, 0)),   # W (resident)
                    pl.BlockSpec((1, H_pad), lambda i, k: (0, 0)),        # bias
                ],
                out_specs=pl.BlockSpec((TM, H_pad), lambda i, k: (i, 0)),
                scratch_shapes=[pltpu.VMEM((TM, in_pad), jnp.float32)]),
            compiler_params=pltpu.CompilerParams(
                dimension_semantics=("parallel", "arbitrary"),
                vmem_limit_bytes=_vmem_limit(footprint)),
            cost_estimate=pl.CostEstimate(flops=flops, transcendentals=0,
                                          bytes_accessed=bytes_accessed),
        )(a_hat, h_bf16, w, b)

    def bn_relu(agg, g, be):
        footprint = N_pad * H_pad * (4 + 2)
        return pl.pallas_call(
            bn_relu_kernel,
            out_shape=jax.ShapeDtypeStruct((N_pad, H_pad), jnp.bfloat16),
            in_specs=[smem, smem, vmem, vmem, vmem],
            out_specs=vmem,
            compiler_params=pltpu.CompilerParams(
                vmem_limit_bytes=_vmem_limit(footprint)),
        )(n_real, invn, agg, g, be)

    def bn_relu_pool(agg, g, be):
        footprint = N_pad * H_pad * 4 + num_graphs * (N_pad * 2 + H_pad * 4)
        return pl.pallas_call(
            bn_relu_pool_kernel,
            out_shape=jax.ShapeDtypeStruct((num_graphs, H_pad), jnp.float32),
            in_specs=[smem, smem, vmem, vmem, vmem, vmem],
            out_specs=vmem,
            compiler_params=pltpu.CompilerParams(
                vmem_limit_bytes=_vmem_limit(footprint)),
        )(n_real, invn, agg, g, be, pool)

    h = x_p
    h = bn_relu(gcn_layer(h, F_pad, Ws[0], Bs[0]), Gs[0], Bes[0])
    h = bn_relu(gcn_layer(h, H_pad, Ws[1], Bs[1]), Gs[1], Bes[1])
    out = bn_relu_pool(gcn_layer(h, H_pad, Ws[2], Bs[2]), Gs[2], Bes[2])
    return out[:, :hidden]


# ----------------------------- reference -----------------------------

def _reference(x, edge_index, batch, params, num_graphs):
    """Pure-JAX reference mirroring the kernel's bf16 storage (f32 compute)."""
    N = x.shape[0]
    hp = jax.lax.Precision.HIGHEST
    src, dst = edge_index[0], edge_index[1]
    A = jnp.zeros((N, N), jnp.float32).at[dst, src].set(1.0) + jnp.eye(N)
    deg = jnp.sum(A, axis=1)
    dinv = jax.lax.rsqrt(jnp.maximum(deg, 1e-12))
    a_hat = (dinv[:, None] * A * dinv[None, :]).astype(jnp.bfloat16).astype(jnp.float32)

    h = x.astype(jnp.bfloat16).astype(jnp.float32)
    for i in (1, 2, 3):
        w = params[f"w{i}"].astype(jnp.bfloat16).astype(jnp.float32)
        b, g, be = params[f"b{i}"], params[f"g{i}"], params[f"be{i}"]
        agg = jnp.dot(a_hat, h, precision=hp)
        agg = jnp.dot(agg.astype(jnp.bfloat16).astype(jnp.float32), w, precision=hp) + b
        mu = jnp.mean(agg, axis=0, keepdims=True)
        var = jnp.maximum(jnp.mean(agg * agg, axis=0, keepdims=True) - mu * mu, 0.0)
        h_full = jnp.maximum((agg - mu) * jax.lax.rsqrt(var + EPS) * g + be, 0.0)
        h = h_full.astype(jnp.bfloat16).astype(jnp.float32) if i < 3 else h_full

    onehot = (batch[None, :] == jnp.arange(num_graphs)[:, None]).astype(jnp.float32)
    pool = onehot / jnp.maximum(jnp.sum(onehot, axis=1, keepdims=True), 1.0)
    return jnp.dot(pool.astype(jnp.bfloat16).astype(jnp.float32),
                   h.astype(jnp.bfloat16).astype(jnp.float32), precision=hp)


if __name__ == "__main__":
    NODE_DIM = 16
    HIDDEN = 64
    N_NODES = 16          # 2 graphs x 8 nodes
    NUM_GRAPHS = 2

    key = jax.random.PRNGKey(0)
    keys = jax.random.split(key, 10)

    # Deterministic synthetic parameters (GCNConv W/b, BN gamma/beta).
    params = {}
    for li, (kw, kb, kg) in enumerate(
        [(keys[0], keys[1], keys[2]),
         (keys[3], keys[4], keys[5]),
         (keys[6], keys[7], keys[8])], start=1):
        in_dim = NODE_DIM if li == 1 else HIDDEN
        params[f"w{li}"] = jax.random.normal(kw, (in_dim, HIDDEN), jnp.float32) * 0.1
        params[f"b{li}"] = jax.random.normal(kb, (1, HIDDEN), jnp.float32) * 0.01
        params[f"g{li}"] = (jnp.ones((1, HIDDEN), jnp.float32)
                            + jax.random.normal(kg, (1, HIDDEN), jnp.float32) * 0.01)
        params[f"be{li}"] = jnp.zeros((1, HIDDEN), jnp.float32)

    # Node features.
    x = jax.random.normal(keys[9], (N_NODES, NODE_DIM), jnp.float32)

    # Two chain graphs of 8 nodes each (bidirectional edges + 2 extras each).
    edges = []
    for g in range(NUM_GRAPHS):
        base = g * 8
        for i in range(7):
            edges.append((base + i, base + i + 1))
            edges.append((base + i + 1, base + i))
        edges.append((base + 0, base + 4))
        edges.append((base + 4, base + 0))
    edge_index = jnp.asarray(np.array(edges, dtype=np.int32).T)   # (2, E)
    batch = jnp.asarray(np.repeat(np.arange(NUM_GRAPHS, dtype=np.int32), 8))

    @partial(jax.jit, static_argnums=(4,))
    def enc_fused(xx, ei, bb, pp, ng):
        return molecular_gcn_encoder(xx, ei, bb, pp, ng, fuse_max_nodes=4096)

    @partial(jax.jit, static_argnums=(4,))
    def enc_tiled(xx, ei, bb, pp, ng):
        return molecular_gcn_encoder(xx, ei, bb, pp, ng, fuse_max_nodes=0)

    out_fused = jax.block_until_ready(enc_fused(x, edge_index, batch, params, NUM_GRAPHS))
    out_tiled = jax.block_until_ready(enc_tiled(x, edge_index, batch, params, NUM_GRAPHS))

    ref = _reference(x, edge_index, batch, params, NUM_GRAPHS)
    np.testing.assert_allclose(np.asarray(out_fused), np.asarray(ref), rtol=5e-3, atol=5e-3)
    np.testing.assert_allclose(np.asarray(out_tiled), np.asarray(ref), rtol=5e-3, atol=5e-3)

    print("KERNEL_OK")
</pallas_src>

<mosaic_0001>
module attributes {stable_mosaic.version = 11 : i64} {
  func.func @fused_gcn_kernel(%arg0: memref<1x1xi32, #tpu.memory_space<smem>>, %arg1: memref<1x1xf32, #tpu.memory_space<smem>>, %arg2: memref<128x128xbf16, #tpu.memory_space<vmem>>, %arg3: memref<128x128xbf16, #tpu.memory_space<vmem>>, %arg4: memref<128x128xbf16, #tpu.memory_space<vmem>>, %arg5: memref<1x128xf32, #tpu.memory_space<vmem>>, %arg6: memref<1x128xf32, #tpu.memory_space<vmem>>, %arg7: memref<1x128xf32, #tpu.memory_space<vmem>>, %arg8: memref<128x128xbf16, #tpu.memory_space<vmem>>, %arg9: memref<1x128xf32, #tpu.memory_space<vmem>>, %arg10: memref<1x128xf32, #tpu.memory_space<vmem>>, %arg11: memref<1x128xf32, #tpu.memory_space<vmem>>, %arg12: memref<128x128xbf16, #tpu.memory_space<vmem>>, %arg13: memref<1x128xf32, #tpu.memory_space<vmem>>, %arg14: memref<1x128xf32, #tpu.memory_space<vmem>>, %arg15: memref<1x128xf32, #tpu.memory_space<vmem>>, %arg16: memref<2x128xbf16, #tpu.memory_space<vmem>>, %arg17: memref<2x128xf32, #tpu.memory_space<vmem>>) attributes {dimension_semantics = [], scalar_prefetch = 0 : i64, scratch_operands = 0 : i64, tpu.core_type = #tpu.core_type<tc>} {
    %c0 = arith.constant 0 : index
    %c0_0 = arith.constant 0 : index
    %0 = memref.load %arg1[%c0, %c0_0] : memref<1x1xf32, #tpu.memory_space<smem>>
    %c0_1 = arith.constant 0 : index
    %c0_2 = arith.constant 0 : index
    %1 = memref.load %arg0[%c0_1, %c0_2] : memref<1x1xi32, #tpu.memory_space<smem>>
    %2 = tpu.iota {dimensions = array<i32: 0>} : vector<128x1xi32>
    %3 = vector.broadcast %1 : i32 to vector<128x1xi32>
    %4 = arith.cmpi slt, %2, %3 : vector<128x1xi32>
    %5 = arith.extui %4 : vector<128x1xi1> to vector<128x1xi32>
    %6 = arith.sitofp %5 : vector<128x1xi32> to vector<128x1xf32>
    %c0_3 = arith.constant 0 : index
    %c0_4 = arith.constant 0 : index
    %7 = vector.load %arg2[%c0_3, %c0_4] : memref<128x128xbf16, #tpu.memory_space<vmem>>, vector<128x128xbf16>
    %c0_5 = arith.constant 0 : index
    %c0_6 = arith.constant 0 : index
    %8 = vector.load %arg3[%c0_5, %c0_6] : memref<128x128xbf16, #tpu.memory_space<vmem>>, vector<128x128xbf16>
    %cst = arith.constant dense<0.000000e+00> : vector<128x128xf32>
    %9 = tpu.matmul %7, %8, %cst {dimension_numbers = #tpu.dot_dimension_numbers<[1], [0], [0], [1], [0, 0, 1, 1], [], []>} : vector<128x128xbf16>, vector<128x128xbf16>, vector<128x128xf32> -> vector<128x128xf32>
    %10 = arith.truncf %9 : vector<128x128xf32> to vector<128x128xbf16>
    %c0_7 = arith.constant 0 : index
    %c0_8 = arith.constant 0 : index
    %11 = vector.load %arg4[%c0_7, %c0_8] : memref<128x128xbf16, #tpu.memory_space<vmem>>, vector<128x128xbf16>
    %cst_9 = arith.constant dense<0.000000e+00> : vector<128x128xf32>
    %12 = tpu.matmul %10, %11, %cst_9 {dimension_numbers = #tpu.dot_dimension_numbers<[1], [0], [0], [1], [0, 0, 1, 1], [], []>} : vector<128x128xbf16>, vector<128x128xbf16>, vector<128x128xf32> -> vector<128x128xf32>
    %c0_10 = arith.constant 0 : index
    %c0_11 = arith.constant 0 : index
    %13 = vector.load %arg5[%c0_10, %c0_11] : memref<1x128xf32, #tpu.memory_space<vmem>>, vector<1x128xf32>
    %14 = vector.broadcast %13 : vector<1x128xf32> to vector<128x128xf32>
    %15 = arith.addf %12, %14 : vector<128x128xf32>
    %c0_12 = arith.constant 0 : index
    %c0_13 = arith.constant 0 : index
    %16 = vector.load %arg6[%c0_12, %c0_13] : memref<1x128xf32, #tpu.memory_space<vmem>>, vector<1x128xf32>
    %c0_14 = arith.constant 0 : index
    %c0_15 = arith.constant 0 : index
    %17 = vector.load %arg7[%c0_14, %c0_15] : memref<1x128xf32, #tpu.memory_space<vmem>>, vector<1x128xf32>
    %18 = vector.broadcast %6 : vector<128x1xf32> to vector<128x128xf32>
    %19 = arith.mulf %15, %18 : vector<128x128xf32>
    %cst_16 = arith.constant dense<0.000000e+00> : vector<128xf32>
    %20 = vector.multi_reduction <add>, %19, %cst_16 [0] : vector<128x128xf32> to vector<128xf32>
    %21 = vector.shape_cast %20 : vector<128xf32> to vector<1x128xf32>
    %22 = vector.broadcast %0 : f32 to vector<1x128xf32>
    %23 = arith.mulf %21, %22 : vector<1x128xf32>
    %24 = arith.mulf %19, %15 : vector<128x128xf32>
    %cst_17 = arith.constant dense<0.000000e+00> : vector<128xf32>
    %25 = vector.multi_reduction <add>, %24, %cst_17 [0] : vector<128x128xf32> to vector<128xf32>
    %26 = vector.shape_cast %25 : vector<128xf32> to vector<1x128xf32>
    %27 = vector.broadcast %0 : f32 to vector<1x128xf32>
    %28 = arith.mulf %26, %27 : vector<1x128xf32>
    %29 = arith.mulf %23, %23 : vector<1x128xf32>
    %30 = arith.subf %28, %29 : vector<1x128xf32>
    %cst_18 = arith.constant 0.000000e+00 : f32
    %31 = vector.broadcast %cst_18 : f32 to vector<1x128xf32>
    %32 = arith.maximumf %30, %31 : vector<1x128xf32>
    %33 = vector.broadcast %23 : vector<1x128xf32> to vector<128x128xf32>
    %34 = arith.subf %15, %33 : vector<128x128xf32>
    %cst_19 = arith.constant 9.99999974E-6 : f32
    %35 = vector.broadcast %cst_19 : f32 to vector<1x128xf32>
    %36 = arith.addf %32, %35 : vector<1x128xf32>
    %37 = math.rsqrt %36 : vector<1x128xf32>
    %38 = vector.broadcast %37 : vector<1x128xf32> to vector<128x128xf32>
    %39 = arith.mulf %34, %38 : vector<128x128xf32>
    %40 = vector.broadcast %16 : vector<1x128xf32> to vector<128x128xf32>
    %41 = arith.mulf %39, %40 : vector<128x128xf32>
    %42 = vector.broadcast %17 : vector<1x128xf32> to vector<128x128xf32>
    %43 = arith.addf %41, %42 : vector<128x128xf32>
    %cst_20 = arith.constant 0.000000e+00 : f32
    %44 = vector.broadcast %cst_20 : f32 to vector<128x128xf32>
    %45 = arith.maximumf %43, %44 : vector<128x128xf32>
    %46 = vector.broadcast %6 : vector<128x1xf32> to vector<128x128xf32>
    %47 = arith.mulf %45, %46 : vector<128x128xf32>
    %48 = arith.truncf %47 : vector<128x128xf32> to vector<128x128xbf16>
    %cst_21 = arith.constant dense<0.000000e+00> : vector<128x128xf32>
    %49 = tpu.matmul %7, %48, %cst_21 {dimension_numbers = #tpu.dot_dimension_numbers<[1], [0], [0], [1], [0, 0, 1, 1], [], []>} : vector<128x128xbf16>, vector<128x128xbf16>, vector<128x128xf32> -> vector<128x128xf32>
    %50 = arith.truncf %49 : vector<128x128xf32> to vector<128x128xbf16>
    %c0_22 = arith.constant 0 : index
    %c0_23 = arith.constant 0 : index
    %51 = vector.load %arg8[%c0_22, %c0_23] : memref<128x128xbf16, #tpu.memory_space<vmem>>, vector<128x128xbf16>
    %cst_24 = arith.constant dense<0.000000e+00> : vector<128x128xf32>
    %52 = tpu.matmul %50, %51, %cst_24 {dimension_numbers = #tpu.dot_dimension_numbers<[1], [0], [0], [1], [0, 0, 1, 1], [], []>} : vector<128x128xbf16>, vector<128x128xbf16>, vector<128x128xf32> -> vector<128x128xf32>
    %c0_25 = arith.constant 0 : index
    %c0_26 = arith.constant 0 : index
    %53 = vector.load %arg9[%c0_25, %c0_26] : memref<1x128xf32, #tpu.memory_space<vmem>>, vector<1x128xf32>
    %54 = vector.broadcast %53 : vector<1x128xf32> to vector<128x128xf32>
    %55 = arith.addf %52, %54 : vector<128x128xf32>
    %c0_27 = arith.constant 0 : index
    %c0_28 = arith.constant 0 : index
    %56 = vector.load %arg10[%c0_27, %c0_28] : memref<1x128xf32, #tpu.memory_space<vmem>>, vector<1x128xf32>
    %c0_29 = arith.constant 0 : index
    %c0_30 = arith.constant 0 : index
    %57 = vector.load %arg11[%c0_29, %c0_30] : memref<1x128xf32, #tpu.memory_space<vmem>>, vector<1x128xf32>
    %58 = vector.broadcast %6 : vector<128x1xf32> to vector<128x128xf32>
    %59 = arith.mulf %55, %58 : vector<128x128xf32>
    %cst_31 = arith.constant dense<0.000000e+00> : vector<128xf32>
    %60 = vector.multi_reduction <add>, %59, %cst_31 [0] : vector<128x128xf32> to vector<128xf32>
    %61 = vector.shape_cast %60 : vector<128xf32> to vector<1x128xf32>
    %62 = vector.broadcast %0 : f32 to vector<1x128xf32>
    %63 = arith.mulf %61, %62 : vector<1x128xf32>
    %64 = arith.mulf %59, %55 : vector<128x128xf32>
    %cst_32 = arith.constant dense<0.000000e+00> : vector<128xf32>
    %65 = vector.multi_reduction <add>, %64, %cst_32 [0] : vector<128x128xf32> to vector<128xf32>
    %66 = vector.shape_cast %65 : vector<128xf32> to vector<1x128xf32>
    %67 = vector.broadcast %0 : f32 to vector<1x128xf32>
    %68 = arith.mulf %66, %67 : vector<1x128xf32>
    %69 = arith.mulf %63, %63 : vector<1x128xf32>
    %70 = arith.subf %68, %69 : vector<1x128xf32>
    %cst_33 = arith.constant 0.000000e+00 : f32
    %71 = vector.broadcast %cst_33 : f32 to vector<1x128xf32>
    %72 = arith.maximumf %70, %71 : vector<1x128xf32>
    %73 = vector.broadcast %63 : vector<1x128xf32> to vector<128x128xf32>
    %74 = arith.subf %55, %73 : vector<128x128xf32>
    %cst_34 = arith.constant 9.99999974E-6 : f32
    %75 = vector.broadcast %cst_34 : f32 to vector<1x128xf32>
    %76 = arith.addf %72, %75 : vector<1x128xf32>
    %77 = math.rsqrt %76 : vector<1x128xf32>
    %78 = vector.broadcast %77 : vector<1x128xf32> to vector<128x128xf32>
    %79 = arith.mulf %74, %78 : vector<128x128xf32>
    %80 = vector.broadcast %56 : vector<1x128xf32> to vector<128x128xf32>
    %81 = arith.mulf %79, %80 : vector<128x128xf32>
    %82 = vector.broadcast %57 : vector<1x128xf32> to vector<128x128xf32>
    %83 = arith.addf %81, %82 : vector<128x128xf32>
    %cst_35 = arith.constant 0.000000e+00 : f32
    %84 = vector.broadcast %cst_35 : f32 to vector<128x128xf32>
    %85 = arith.maximumf %83, %84 : vector<128x128xf32>
    %86 = vector.broadcast %6 : vector<128x1xf32> to vector<128x128xf32>
    %87 = arith.mulf %85, %86 : vector<128x128xf32>
    %88 = arith.truncf %87 : vector<128x128xf32> to vector<128x128xbf16>
    %cst_36 = arith.constant dense<0.000000e+00> : vector<128x128xf32>
    %89 = tpu.matmul %7, %88, %cst_36 {dimension_numbers = #tpu.dot_dimension_numbers<[1], [0], [0], [1], [0, 0, 1, 1], [], []>} : vector<128x128xbf16>, vector<128x128xbf16>, vector<128x128xf32> -> vector<128x128xf32>
    %90 = arith.truncf %89 : vector<128x128xf32> to vector<128x128xbf16>
    %c0_37 = arith.constant 0 : index
    %c0_38 = arith.constant 0 : index
    %91 = vector.load %arg12[%c0_37, %c0_38] : memref<128x128xbf16, #tpu.memory_space<vmem>>, vector<128x128xbf16>
    %cst_39 = arith.constant dense<0.000000e+00> : vector<128x128xf32>
    %92 = tpu.matmul %90, %91, %cst_39 {dimension_numbers = #tpu.dot_dimension_numbers<[1], [0], [0], [1], [0, 0, 1, 1], [], []>} : vector<128x128xbf16>, vector<128x128xbf16>, vector<128x128xf32> -> vector<128x128xf32>
    %c0_40 = arith.constant 0 : index
    %c0_41 = arith.constant 0 : index
    %93 = vector.load %arg13[%c0_40, %c0_41] : memref<1x128xf32, #tpu.memory_space<vmem>>, vector<1x128xf32>
    %94 = vector.broadcast %93 : vector<1x128xf32> to vector<128x128xf32>
    %95 = arith.addf %92, %94 : vector<128x128xf32>
    %c0_42 = arith.constant 0 : index
    %c0_43 = arith.constant 0 : index
    %96 = vector.load %arg14[%c0_42, %c0_43] : memref<1x128xf32, #tpu.memory_space<vmem>>, vector<1x128xf32>
    %c0_44 = arith.constant 0 : index
    %c0_45 = arith.constant 0 : index
    %97 = vector.load %arg15[%c0_44, %c0_45] : memref<1x128xf32, #tpu.memory_space<vmem>>, vector<1x128xf32>
    %98 = vector.broadcast %6 : vector<128x1xf32> to vector<128x128xf32>
    %99 = arith.mulf %95, %98 : vector<128x128xf32>
    %cst_46 = arith.constant dense<0.000000e+00> : vector<128xf32>
    %100 = vector.multi_reduction <add>, %99, %cst_46 [0] : vector<128x128xf32> to vector<128xf32>
    %101 = vector.shape_cast %100 : vector<128xf32> to vector<1x128xf32>
    %102 = vector.broadcast %0 : f32 to vector<1x128xf32>
    %103 = arith.mulf %101, %102 : vector<1x128xf32>
    %104 = arith.mulf %99, %95 : vector<128x128xf32>
    %cst_47 = arith.constant dense<0.000000e+00> : vector<128xf32>
    %105 = vector.multi_reduction <add>, %104, %cst_47 [0] : vector<128x128xf32> to vector<128xf32>
    %106 = vector.shape_cast %105 : vector<128xf32> to vector<1x128xf32>
    %107 = vector.broadcast %0 : f32 to vector<1x128xf32>
    %108 = arith.mulf %106, %107 : vector<1x128xf32>
    %109 = arith.mulf %103, %103 : vector<1x128xf32>
    %110 = arith.subf %108, %109 : vector<1x128xf32>
    %cst_48 = arith.constant 0.000000e+00 : f32
    %111 = vector.broadcast %cst_48 : f32 to vector<1x128xf32>
    %112 = arith.maximumf %110, %111 : vector<1x128xf32>
    %113 = vector.broadcast %103 : vector<1x128xf32> to vector<128x128xf32>
    %114 = arith.subf %95, %113 : vector<128x128xf32>
    %cst_49 = arith.constant 9.99999974E-6 : f32
    %115 = vector.broadcast %cst_49 : f32 to vector<1x128xf32>
    %116 = arith.addf %112, %115 : vector<1x128xf32>
    %117 = math.rsqrt %116 : vector<1x128xf32>
    %118 = vector.broadcast %117 : vector<1x128xf32> to vector<128x128xf32>
    %119 = arith.mulf %114, %118 : vector<128x128xf32>
    %120 = vector.broadcast %96 : vector<1x128xf32> to vector<128x128xf32>
    %121 = arith.mulf %119, %120 : vector<128x128xf32>
    %122 = vector.broadcast %97 : vector<1x128xf32> to vector<128x128xf32>
    %123 = arith.addf %121, %122 : vector<128x128xf32>
    %cst_50 = arith.constant 0.000000e+00 : f32
    %124 = vector.broadcast %cst_50 : f32 to vector<128x128xf32>
    %125 = arith.maximumf %123, %124 : vector<128x128xf32>
    %126 = vector.broadcast %6 : vector<128x1xf32> to vector<128x128xf32>
    %127 = arith.mulf %125, %126 : vector<128x128xf32>
    %c0_51 = arith.constant 0 : index
    %c0_52 = arith.constant 0 : index
    %128 = vector.load %arg16[%c0_51, %c0_52] : memref<2x128xbf16, #tpu.memory_space<vmem>>, vector<2x128xbf16>
    %129 = arith.truncf %127 : vector<128x128xf32> to vector<128x128xbf16>
    %cst_53 = arith.constant dense<0.000000e+00> : vector<2x128xf32>
    %130 = tpu.matmul %128, %129, %cst_53 {dimension_numbers = #tpu.dot_dimension_numbers<[1], [0], [0], [1], [0, 0, 1, 1], [], []>} : vector<2x128xbf16>, vector<128x128xbf16>, vector<2x128xf32> -> vector<2x128xf32>
    %c0_54 = arith.constant 0 : index
    %c0_55 = arith.constant 0 : index
    %131 = vector.load %arg17[%c0_54, %c0_55] : memref<2x128xf32, #tpu.memory_space<vmem>>, vector<2x128xf32>
    tpu.vector_store %arg17[%c0_54, %c0_55], %130 {strides = array<i32>} : memref<2x128xf32, #tpu.memory_space<vmem>>, vector<2x128xf32>,
    return
  }
}

</mosaic_0001>

<llo_original>
// kernel: enc_fused.1
$region0: #{enc_fused.1}
  #allocation0 [shape = 'u32[]', space=smem, size = 0x4, offset = 0x4, fixed_abs, tag = 'smem constant byte address 0x4 - core index']
  #allocation1 [shape = 'u32[144,128]{1,0:T(1,128)}', space=vmem, size = 0x12000, scoped, tag = 'internal scratch']
  #allocation2 [shape = 's32[1,1]{1,0:T(1,128)S(6)}', space=smem, size = 0x200, scoped, tag = 'scoped memory for enc_fused.1']
  #allocation3 [shape = 'f32[1,1]{1,0:T(1,128)S(6)}', space=smem, size = 0x200, scoped, tag = 'scoped memory for enc_fused.1']
  %s0 = inlined_call_operand.<no memory space> [shape: s32[1,1], index: 0, kind: input, shape index: {}]
  %s1 = inlined_call_operand.<no memory space> [shape: f32[1,1], index: 1, kind: input, shape index: {}]
  %s2 = inlined_call_operand.vmem [shape: bf16[128,128], index: 2, kind: input, shape index: {}]
  %s3 = inlined_call_operand.vmem [shape: bf16[128,128], index: 3, kind: input, shape index: {}]
  %s4 = inlined_call_operand.vmem [shape: bf16[128,128], index: 4, kind: input, shape index: {}]
  %s5 = inlined_call_operand.vmem [shape: f32[1,128], index: 5, kind: input, shape index: {}]
  %s6 = inlined_call_operand.vmem [shape: f32[1,128], index: 6, kind: input, shape index: {}]
  %s7 = inlined_call_operand.vmem [shape: f32[1,128], index: 7, kind: input, shape index: {}]
  %s8 = inlined_call_operand.vmem [shape: bf16[128,128], index: 8, kind: input, shape index: {}]
  %s9 = inlined_call_operand.vmem [shape: f32[1,128], index: 9, kind: input, shape index: {}]
  %s10 = inlined_call_operand.vmem [shape: f32[1,128], index: 10, kind: input, shape index: {}]
  %s11 = inlined_call_operand.vmem [shape: f32[1,128], index: 11, kind: input, shape index: {}]
  %s12 = inlined_call_operand.vmem [shape: bf16[128,128], index: 12, kind: input, shape index: {}]
  %s13 = inlined_call_operand.vmem [shape: f32[1,128], index: 13, kind: input, shape index: {}]
  %s14 = inlined_call_operand.vmem [shape: f32[1,128], index: 14, kind: input, shape index: {}]
  %s15 = inlined_call_operand.vmem [shape: f32[1,128], index: 15, kind: input, shape index: {}]
  %s16 = inlined_call_operand.vmem [shape: bf16[2,128], index: 16, kind: input, shape index: {}]
  %s17 = inlined_call_operand.hbm [shape: f32[2,128], index: 17, kind: output, shape index: {}]
  %s18 = sld [smem:[#allocation0]]
  $region78: #{enc_fused.1} parent=0
    _
  %s20 = ssub.s32 1, %s18
  %s21 = scalar_select 0, %s20, %s18
  %22 = sst [smem:[#allocation2]] %s0
  %23 = sst [smem:[#allocation3]] %s1
  $region1: #{enc_fused.1} parent=0
    #allocation4 [shape = 'u8[1024]{0}', space=vmem, size = 0x400, scoped, tag = 'output window, operand 0, single buffered']
    #allocation5 [shape = 's32[1]{0}', space=sflag, size = 0x4, scoped, tag = 'scoped memory for enc_fused.1']
    %24 = vsyncpa [#allocation5], 0
    // Predicated region
    $region2: #{enc_fused.1} parent=1 // pred_check
      _
    $region3: #{enc_fused.1} parent=1 // pred_check_branch
      %26 = sbr.rel (0) target = $region5
    $region4: #{enc_fused.1} parent=1 // pred_region
      _
    $region5: #{enc_fused.1} parent=1 // pred_fallthru
      _
    // Predicated region
    $region6: #{enc_fused.1} parent=1 // pred_check
      _
    $region7: #{enc_fused.1} parent=1 // pred_check_branch
      %28 = sbr.rel (0) target = $region9
    $region8: #{enc_fused.1} parent=1 // pred_region
      _
    $region9: #{enc_fused.1} parent=1 // pred_fallthru
      _
    // Predicated region
    $region10: #{enc_fused.1} parent=1 // pred_check
      _
    $region11: #{enc_fused.1} parent=1 // pred_check_branch
      %30 = sbr.rel (0) target = $region13
    $region12: #{enc_fused.1} parent=1 // pred_region
      _
    $region13: #{enc_fused.1} parent=1 // pred_fallthru
      _
    // Predicated region
    $region14: #{enc_fused.1} parent=1 // pred_check
      _
    $region15: #{enc_fused.1} parent=1 // pred_check_branch
      %32 = sbr.rel (0) target = $region17
    $region16: #{enc_fused.1} parent=1 // pred_region
      _
    $region17: #{enc_fused.1} parent=1 // pred_fallthru
      _
    // Predicated region
    $region18: #{enc_fused.1} parent=1 // pred_check
      _
    $region19: #{enc_fused.1} parent=1 // pred_check_branch
      %34 = sbr.rel (0) target = $region21
    $region20: #{enc_fused.1} parent=1 // pred_region
      _
    $region21: #{enc_fused.1} parent=1 // pred_fallthru
      _
    // Predicated region
    $region22: #{enc_fused.1} parent=1 // pred_check
      _
    $region23: #{enc_fused.1} parent=1 // pred_check_branch
      %36 = sbr.rel (0) target = $region25
    $region24: #{enc_fused.1} parent=1 // pred_region
      _
    $region25: #{enc_fused.1} parent=1 // pred_fallthru
      _
    // Predicated region
    $region26: #{enc_fused.1} parent=1 // pred_check
      _
    $region27: #{enc_fused.1} parent=1 // pred_check_branch
      %38 = sbr.rel (0) target = $region29
    $region28: #{enc_fused.1} parent=1 // pred_region
      _
    $region29: #{enc_fused.1} parent=1 // pred_fallthru
      _
    // Predicated region
    $region30: #{enc_fused.1} parent=1 // pred_check
      _
    $region31: #{enc_fused.1} parent=1 // pred_check_branch
      %40 = sbr.rel (0) target = $region33
    $region32: #{enc_fused.1} parent=1 // pred_region
      _
    $region33: #{enc_fused.1} parent=1 // pred_fallthru
      _
    // Predicated region
    $region34: #{enc_fused.1} parent=1 // pred_check
      _
    $region35: #{enc_fused.1} parent=1 // pred_check_branch
      %42 = sbr.rel (0) target = $region37
    $region36: #{enc_fused.1} parent=1 // pred_region
      _
    $region37: #{enc_fused.1} parent=1 // pred_fallthru
      _
    // Predicated region
    $region38: #{enc_fused.1} parent=1 // pred_check
      _
    $region39: #{enc_fused.1} parent=1 // pred_check_branch
      %44 = sbr.rel (0) target = $region41
    $region40: #{enc_fused.1} parent=1 // pred_region
      _
    $region41: #{enc_fused.1} parent=1 // pred_fallthru
      _
    // Predicated region
    $region42: #{enc_fused.1} parent=1 // pred_check
      _
    $region43: #{enc_fused.1} parent=1 // pred_check_branch
      %46 = sbr.rel (0) target = $region45
    $region44: #{enc_fused.1} parent=1 // pred_region
      _
    $region45: #{enc_fused.1} parent=1 // pred_fallthru
      _
    // Predicated region
    $region46: #{enc_fused.1} parent=1 // pred_check
      _
    $region47: #{enc_fused.1} parent=1 // pred_check_branch
      %48 = sbr.rel (0) target = $region49
    $region48: #{enc_fused.1} parent=1 // pred_region
      _
    $region49: #{enc_fused.1} parent=1 // pred_fallthru
      _
    // Predicated region
    $region50: #{enc_fused.1} parent=1 // pred_check
      _
    $region51: #{enc_fused.1} parent=1 // pred_check_branch
      %50 = sbr.rel (0) target = $region53
    $region52: #{enc_fused.1} parent=1 // pred_region
      _
    $region53: #{enc_fused.1} parent=1 // pred_fallthru
      _
    // Predicated region
    $region54: #{enc_fused.1} parent=1 // pred_check
      _
    $region55: #{enc_fused.1} parent=1 // pred_check_branch
      %52 = sbr.rel (0) target = $region57
    $region56: #{enc_fused.1} parent=1 // pred_region
      _
    $region57: #{enc_fused.1} parent=1 // pred_fallthru
      _
    // Predicated region
    $region58: #{enc_fused.1} parent=1 // pred_check
      _
    $region59: #{enc_fused.1} parent=1 // pred_check_branch
      %54 = sbr.rel (0) target = $region61
    $region60: #{enc_fused.1} parent=1 // pred_region
      _
    $region61: #{enc_fused.1} parent=1 // pred_fallthru
      _
    // Predicated region
    $region62: #{enc_fused.1} parent=1 // pred_check
      _
    $region63: #{enc_fused.1} parent=1 // pred_check_branch
      %56 = sbr.rel (0) target = $region65
    $region64: #{enc_fused.1} parent=1 // pred_region
      _
    $region65: #{enc_fused.1} parent=1 // pred_fallthru
      _
    // Predicated region
    $region66: #{enc_fused.1} parent=1 // pred_check
      _
    $region67: #{enc_fused.1} parent=1 // pred_check_branch
      %58 = sbr.rel (0) target = $region69
    $region68: #{enc_fused.1} parent=1 // pred_region
      _
    $region69: #{enc_fused.1} parent=1 // pred_fallthru
      _
    %s60 = sld [smem:[#allocation3]]
    %s61 = sld [smem:[#allocation2]]
    %v62 = vlaneseq
    %v63 = vshrl.u32 %v62, 7
    %v64 = vadd.s32 %v63, 8
    %v65 = vadd.s32 %v63, 16
    %v66 = vadd.s32 %v63, 24
    %v67 = vadd.s32 %v63, 32
    %v68 = vadd.s32 %v63, 40
    %v69 = vadd.s32 %v63, 48
    %v70 = vadd.s32 %v63, 56
    %v71 = vadd.s32 %v63, 64
    %v72 = vadd.s32 %v63, 72
    %v73 = vadd.s32 %v63, 80
    %v74 = vadd.s32 %v63, 88
    %v75 = vadd.s32 %v63, 96
    %v76 = vadd.s32 %v63, 104
    %v77 = vadd.s32 %v63, 112
    %v78 = vadd.s32 %v63, 120
    %v79 = vstv %s61
    %vm80 = vcmp.lt.s32.totalorder %v63, %v79
    %vm81 = vcmp.lt.s32.totalorder %v64, %v79
    %vm82 = vcmp.lt.s32.totalorder %v65, %v79
    %vm83 = vcmp.lt.s32.totalorder %v66, %v79
    %vm84 = vcmp.lt.s32.totalorder %v67, %v79
    %vm85 = vcmp.lt.s32.totalorder %v68, %v79
    %vm86 = vcmp.lt.s32.totalorder %v69, %v79
    %vm87 = vcmp.lt.s32.totalorder %v70, %v79
    %vm88 = vcmp.lt.s32.totalorder %v71, %v79
    %vm89 = vcmp.lt.s32.totalorder %v72, %v79
    %vm90 = vcmp.lt.s32.totalorder %v73, %v79
    %vm91 = vcmp.lt.s32.totalorder %v74, %v79
    %vm92 = vcmp.lt.s32.totalorder %v75, %v79
    %vm93 = vcmp.lt.s32.totalorder %v76, %v79
    %vm94 = vcmp.lt.s32.totalorder %v77, %v79
    %vm95 = vcmp.lt.s32.totalorder %v78, %v79
    %v96 = vsel %vm80, 1, 0
    %v97 = vsel %vm81, 1, 0
    %v98 = vsel %vm82, 1, 0
    %v99 = vsel %vm83, 1, 0
    %v100 = vsel %vm84, 1, 0
    %v101 = vsel %vm85, 1, 0
    %v102 = vsel %vm86, 1, 0
    %v103 = vsel %vm87, 1, 0
    %v104 = vsel %vm88, 1, 0
    %v105 = vsel %vm89, 1, 0
    %v106 = vsel %vm90, 1, 0
    %v107 = vsel %vm91, 1, 0
    %v108 = vsel %vm92, 1, 0
    %v109 = vsel %vm93, 1, 0
    %v110 = vsel %vm94, 1, 0
    %v111 = vsel %vm95, 1, 0
    %v112 = vcvt.s32.f32 %v96
    %v113 = vcvt.s32.f32 %v97
    %v114 = vcvt.s32.f32 %v98
    %v115 = vcvt.s32.f32 %v99
    %v116 = vcvt.s32.f32 %v100
    %v117 = vcvt.s32.f32 %v101
    %v118 = vcvt.s32.f32 %v102
    %v119 = vcvt.s32.f32 %v103
    %v120 = vcvt.s32.f32 %v104
    %v121 = vcvt.s32.f32 %v105
    %v122 = vcvt.s32.f32 %v106
    %v123 = vcvt.s32.f32 %v107
    %v124 = vcvt.s32.f32 %v108
    %v125 = vcvt.s32.f32 %v109
    %v126 = vcvt.s32.f32 %v110
    %v127 = vcvt.s32.f32 %v111
    %v128 = vld [vmem:[%s2] sm:$0xf]
    %v129 = vld [vmem:[%s2 + $0x4] sm:$0xf]
    %v130 = vld [vmem:[%s2 + $0x8] sm:$0xf]
    %v131 = vld [vmem:[%s2 + $0xc] sm:$0xf]
    %v132 = vld [vmem:[%s2 + $0x10] sm:$0xf]
    %v133 = vld [vmem:[%s2 + $0x14] sm:$0xf]
    %v134 = vld [vmem:[%s2 + $0x18] sm:$0xf]
    %v135 = vld [vmem:[%s2 + $0x1c] sm:$0xf]
    %v136 = vld [vmem:[%s2 + $0x20] sm:$0xf]
    %v137 = vld [vmem:[%s2 + $0x24] sm:$0xf]
    %v138 = vld [vmem:[%s2 + $0x28] sm:$0xf]
    %v139 = vld [vmem:[%s2 + $0x2c] sm:$0xf]
    %v140 = vld [vmem:[%s2 + $0x30] sm:$0xf]
    %v141 = vld [vmem:[%s2 + $0x34] sm:$0xf]
    %v142 = vld [vmem:[%s2 + $0x38] sm:$0xf]
    %v143 = vld [vmem:[%s2 + $0x3c] sm:$0xf]
    %v144 = vld [vmem:[%s3] sm:$0xf]
    %v145 = vld [vmem:[%s3 + $0x4] sm:$0xf]
    %v146 = vld [vmem:[%s3 + $0x8] sm:$0xf]
    %v147 = vld [vmem:[%s3 + $0xc] sm:$0xf]
    %v148 = vld [vmem:[%s3 + $0x10] sm:$0xf]
    %v149 = vld [vmem:[%s3 + $0x14] sm:$0xf]
    %v150 = vld [vmem:[%s3 + $0x18] sm:$0xf]
    %v151 = vld [vmem:[%s3 + $0x1c] sm:$0xf]
    %v152 = vld [vmem:[%s3 + $0x20] sm:$0xf]
    %v153 = vld [vmem:[%s3 + $0x24] sm:$0xf]
    %v154 = vld [vmem:[%s3 + $0x28] sm:$0xf]
    %v155 = vld [vmem:[%s3 + $0x2c] sm:$0xf]
    %v156 = vld [vmem:[%s3 + $0x30] sm:$0xf]
    %v157 = vld [vmem:[%s3 + $0x34] sm:$0xf]
    %v158 = vld [vmem:[%s3 + $0x38] sm:$0xf]
    %v159 = vld [vmem:[%s3 + $0x3c] sm:$0xf]
    %v176 = vunpack.c.l.b16 %v128
    %v177 = vunpack.c.l.b16 %v129
    %v178 = vunpack.c.l.b16 %v130
    %v179 = vunpack.c.l.b16 %v131
    %v180 = vunpack.c.l.b16 %v132
    %v181 = vunpack.c.l.b16 %v133
    %v182 = vunpack.c.l.b16 %v134
    %v183 = vunpack.c.l.b16 %v135
    %v184 = vunpack.c.l.b16 %v136
    %v185 = vunpack.c.l.b16 %v137
    %v186 = vunpack.c.l.b16 %v138
    %v187 = vunpack.c.l.b16 %v139
    %v188 = vunpack.c.l.b16 %v140
    %v189 = vunpack.c.l.b16 %v141
    %v190 = vunpack.c.l.b16 %v142
    %v191 = vunpack.c.l.b16 %v143
    %v192 = vpack.c.b16 %v177, %v176
    %v193 = vpack.c.b16 %v179, %v178
    %v194 = vpack.c.b16 %v181, %v180
    %v195 = vpack.c.b16 %v183, %v182
    %v196 = vpack.c.b16 %v185, %v184
    %v197 = vpack.c.b16 %v187, %v186
    %v198 = vpack.c.b16 %v189, %v188
    %v199 = vpack.c.b16 %v191, %v190
    %v224 = vunpack.c.l.b16 %v144
    %v225 = vunpack.c.l.b16 %v145
    %v226 = vunpack.c.l.b16 %v146
    %v227 = vunpack.c.l.b16 %v147
    %v228 = vunpack.c.l.b16 %v148
    %v229 = vunpack.c.l.b16 %v149
    %v230 = vunpack.c.l.b16 %v150
    %v231 = vunpack.c.l.b16 %v151
    %v232 = vunpack.c.l.b16 %v152
    %v233 = vunpack.c.l.b16 %v153
    %v234 = vunpack.c.l.b16 %v154
    %v235 = vunpack.c.l.b16 %v155
    %v236 = vunpack.c.l.b16 %v156
    %v237 = vunpack.c.l.b16 %v157
    %v238 = vunpack.c.l.b16 %v158
    %v239 = vunpack.c.l.b16 %v159
    %v240 = vpack.c.b16 %v225, %v224
    %v241 = vpack.c.b16 %v227, %v226
    %v242 = vpack.c.b16 %v229, %v228
    %v243 = vpack.c.b16 %v231, %v230
    %v244 = vpack.c.b16 %v233, %v232
    %v245 = vpack.c.b16 %v235, %v234
    %v246 = vpack.c.b16 %v237, %v236
    %v247 = vpack.c.b16 %v239, %v238
    %256 = vmatprep.subr.bf16.mxu0 0
    %257 = vmatpush1.bf16.msra.mxu0 %v240
    %258 = vmatprep.subr.bf16.mxu0 0
    %259 = vmatpush1.bf16.msra.mxu0 %v241
    %260 = vmatprep.subr.bf16.mxu0 0
    %261 = vmatpush1.bf16.msra.mxu0 %v242
    %262 = vmatprep.subr.bf16.mxu0 0
    %263 = vmatpush1.bf16.msra.mxu0 %v243
    %264 = vmatprep.subr.bf16.mxu0 0
    %265 = vmatpush1.bf16.msra.mxu0 %v244
    %266 = vmatprep.subr.bf16.mxu0 0
    %267 = vmatpush1.bf16.msra.mxu0 %v245
    %268 = vmatprep.subr.bf16.mxu0 0
    %269 = vmatpush1.bf16.msra.mxu0 %v246
    %270 = vmatprep.subr.bf16.mxu0 0
    %271 = vmatpush1.bf16.msra.mxu0 %v247
    %272 = vmatprep.subr.bf16.mxu0 0
    %273 = vmatpush1.bf16.msra.mxu0 0
    %274 = vmatprep.subr.bf16.mxu0 0
    %275 = vmatpush1.bf16.msra.mxu0 0
    %276 = vmatprep.subr.bf16.mxu0 0
    %277 = vmatpush1.bf16.msra.mxu0 0
    %278 = vmatprep.subr.bf16.mxu0 0
    %279 = vmatpush1.bf16.msra.mxu0 0
    %280 = vmatprep.subr.bf16.mxu0 0
    %281 = vmatpush1.bf16.msra.mxu0 0
    %282 = vmatprep.subr.bf16.mxu0 0
    %283 = vmatpush1.bf16.msra.mxu0 0
    %284 = vmatprep.subr.bf16.mxu0 0
    %285 = vmatpush1.bf16.msra.mxu0 0
    %286 = vmatprep.subr.bf16.mxu0 0
    %287 = vmatpush1.bf16.msra.mxu0 0
    %288 = vmatprep.mubr.bf16.mxu0 0
    %289 = vmatmul.mubr.bf16.gmra.mrb[0].mxu0 %v192
    %v290 = vpop.f32.mrb[0].mxu0
    %v291 = vadd.f32 0.0, %v290
    %v292 = vpop.f32.mrb[0].mxu0
    %v293 = vpop.f32.mrb[0].mxu0
    %v294 = vadd.f32 0.0, %v293
    %v295 = vpop.f32.mrb[0].mxu0
    %296 = vmatprep.mubr.bf16.mxu0 0
    %297 = vmatmul.mubr.bf16.gmra.mrb[0].mxu0 %v193
    %v298 = vpop.f32.mrb[0].mxu0
    %v299 = vadd.f32 0.0, %v298
    %v300 = vpop.f32.mrb[0].mxu0
    %v301 = vpop.f32.mrb[0].mxu0
    %v302 = vadd.f32 0.0, %v301
    %v303 = vpop.f32.mrb[0].mxu0
    %304 = vmatprep.mubr.bf16.mxu0 0
    %305 = vmatmul.mubr.bf16.gmra.mrb[0].mxu0 %v194
    %v306 = vpop.f32.mrb[0].mxu0
    %v307 = vadd.f32 0.0, %v306
    %v308 = vpop.f32.mrb[0].mxu0
    %v309 = vpop.f32.mrb[0].mxu0
    %v310 = vadd.f32 0.0, %v309
    %v311 = vpop.f32.mrb[0].mxu0
    %312 = vmatprep.mubr.bf16.mxu0 0
    %313 = vmatmul.mubr.bf16.gmra.mrb[0].mxu0 %v195
    %v314 = vpop.f32.mrb[0].mxu0
    %v315 = vadd.f32 0.0, %v314
    %v316 = vpop.f32.mrb[0].mxu0
    %v317 = vpop.f32.mrb[0].mxu0
    %v318 = vadd.f32 0.0, %v317
    %v319 = vpop.f32.mrb[0].mxu0
    %320 = vmatprep.mubr.bf16.mxu0 0
    %321 = vmatmul.mubr.bf16.gmra.mrb[0].mxu0 %v196
    %v322 = vpop.f32.mrb[0].mxu0
    %v323 = vadd.f32 0.0, %v322
    %v324 = vpop.f32.mrb[0].mxu0
    %v325 = vpop.f32.mrb[0].mxu0
    %v326 = vadd.f32 0.0, %v325
    %v327 = vpop.f32.mrb[0].mxu0
    %328 = vmatprep.mubr.bf16.mxu0 0
    %329 = vmatmul.mubr.bf16.gmra.mrb[0].mxu0 %v197
    %v330 = vpop.f32.mrb[0].mxu0
    %v331 = vadd.f32 0.0, %v330
    %v332 = vpop.f32.mrb[0].mxu0
    %v333 = vpop.f32.mrb[0].mxu0
    %v334 = vadd.f32 0.0, %v333
    %v335 = vpop.f32.mrb[0].mxu0
    %336 = vmatprep.mubr.bf16.mxu0 0
    %337 = vmatmul.mubr.bf16.gmra.mrb[0].mxu0 %v198
    %v338 = vpop.f32.mrb[0].mxu0
    %v339 = vadd.f32 0.0, %v338
    %v340 = vpop.f32.mrb[0].mxu0
    %v341 = vpop.f32.mrb[0].mxu0
    %v342 = vadd.f32 0.0, %v341
    %v343 = vpop.f32.mrb[0].mxu0
    %344 = vmatprep.mubr.bf16.mxu0 0
    %345 = vmatmul.mubr.bf16.gmra.mrb[0].mxu0 %v199
    %v346 = vpop.f32.mrb[0].mxu0
    %v347 = vadd.f32 0.0, %v346
    %v348 = vpop.f32.mrb[0].mxu0
    %v349 = vpop.f32.mrb[0].mxu0
    %v350 = vadd.f32 0.0, %v349
    %v351 = vpop.f32.mrb[0].mxu0
    %352 = vdwg.mxu0
    %v353 = vpack.c.bf16 %v294, %v291
    %v354 = vpack.c.bf16 %v302, %v299
    %v355 = vpack.c.bf16 %v310, %v307
    %v356 = vpack.c.bf16 %v318, %v315
    %v357 = vpack.c.bf16 %v326, %v323
    %v358 = vpack.c.bf16 %v334, %v331
    %v359 = vpack.c.bf16 %v342, %v339
    %v360 = vpack.c.bf16 %v350, %v347
    %v361 = vld [vmem:[%s4] sm:$0xf]
    %v362 = vld [vmem:[%s4 + $0x4] sm:$0xf]
    %v363 = vld [vmem:[%s4 + $0x8] sm:$0xf]
    %v364 = vld [vmem:[%s4 + $0xc] sm:$0xf]
    %v365 = vld [vmem:[%s4 + $0x10] sm:$0xf]
    %v366 = vld [vmem:[%s4 + $0x14] sm:$0xf]
    %v367 = vld [vmem:[%s4 + $0x18] sm:$0xf]
    %v368 = vld [vmem:[%s4 + $0x1c] sm:$0xf]
    %v369 = vld [vmem:[%s4 + $0x20] sm:$0xf]
    %v370 = vld [vmem:[%s4 + $0x24] sm:$0xf]
    %v371 = vld [vmem:[%s4 + $0x28] sm:$0xf]
    %v372 = vld [vmem:[%s4 + $0x2c] sm:$0xf]
    %v373 = vld [vmem:[%s4 + $0x30] sm:$0xf]
    %v374 = vld [vmem:[%s4 + $0x34] sm:$0xf]
    %v375 = vld [vmem:[%s4 + $0x38] sm:$0xf]
    %v376 = vld [vmem:[%s4 + $0x3c] sm:$0xf]
    %v377 = vld [vmem:[%s5] sm:$0x1]
    %v379 = vlaneseq
    %v380 = vshrl.u32 %v379, 7
    %v381 = vsub.s32 0, %v380
    %v382 = vrot.slane %v377, %v381
    %v400 = vunpack.c.l.b16 %v361
    %v401 = vunpack.c.l.b16 %v362
    %v402 = vunpack.c.l.b16 %v363
    %v403 = vunpack.c.l.b16 %v364
    %v404 = vunpack.c.l.b16 %v365
    %v405 = vunpack.c.l.b16 %v366
    %v406 = vunpack.c.l.b16 %v367
    %v407 = vunpack.c.l.b16 %v368
    %v408 = vunpack.c.l.b16 %v369
    %v409 = vunpack.c.l.b16 %v370
    %v410 = vunpack.c.l.b16 %v371
    %v411 = vunpack.c.l.b16 %v372
    %v412 = vunpack.c.l.b16 %v373
    %v413 = vunpack.c.l.b16 %v374
    %v414 = vunpack.c.l.b16 %v375
    %v415 = vunpack.c.l.b16 %v376
    %v416 = vpack.c.b16 %v401, %v400
    %v417 = vpack.c.b16 %v403, %v402
    %v418 = vpack.c.b16 %v405, %v404
    %v419 = vpack.c.b16 %v407, %v406
    %v420 = vpack.c.b16 %v409, %v408
    %v421 = vpack.c.b16 %v411, %v410
    %v422 = vpack.c.b16 %v413, %v412
    %v423 = vpack.c.b16 %v415, %v414
    %432 = vmatprep.subr.bf16.mxu0 0
    %433 = vmatpush1.bf16.msra.mxu0 %v416
    %434 = vmatprep.subr.bf16.mxu0 0
    %435 = vmatpush1.bf16.msra.mxu0 %v417
    %436 = vmatprep.subr.bf16.mxu0 0
    %437 = vmatpush1.bf16.msra.mxu0 %v418
    %438 = vmatprep.subr.bf16.mxu0 0
    %439 = vmatpush1.bf16.msra.mxu0 %v419
    %440 = vmatprep.subr.bf16.mxu0 0
    %441 = vmatpush1.bf16.msra.mxu0 %v420
    %442 = vmatprep.subr.bf16.mxu0 0
    %443 = vmatpush1.bf16.msra.mxu0 %v421
    %444 = vmatprep.subr.bf16.mxu0 0
    %445 = vmatpush1.bf16.msra.mxu0 %v422
    %446 = vmatprep.subr.bf16.mxu0 0
    %447 = vmatpush1.bf16.msra.mxu0 %v423
    %448 = vmatprep.subr.bf16.mxu0 0
    %449 = vmatpush1.bf16.msra.mxu0 0
    %450 = vmatprep.subr.bf16.mxu0 0
    %451 = vmatpush1.bf16.msra.mxu0 0
    %452 = vmatprep.subr.bf16.mxu0 0
    %453 = vmatpush1.bf16.msra.mxu0 0
    %454 = vmatprep.subr.bf16.mxu0 0
    %455 = vmatpush1.bf16.msra.mxu0 0
    %456 = vmatprep.subr.bf16.mxu0 0
    %457 = vmatpush1.bf16.msra.mxu0 0
    %458 = vmatprep.subr.bf16.mxu0 0
    %459 = vmatpush1.bf16.msra.mxu0 0
    %460 = vmatprep.subr.bf16.mxu0 0
    %461 = vmatpush1.bf16.msra.mxu0 0
    %462 = vmatprep.subr.bf16.mxu0 0
    %463 = vmatpush1.bf16.msra.mxu0 0
    %464 = vmatprep.mubr.bf16.mxu0 0
    %465 = vmatmul.mubr.bf16.gmra.mrb[0].mxu0 %v353
    %v466 = vpop.f32.mrb[0].mxu0
    %v467 = vadd.f32 %v382, %v466
    %v468 = vpop.f32.mrb[0].mxu0
    %v469 = vpop.f32.mrb[0].mxu0
    %v470 = vadd.f32 %v382, %v469
    %v471 = vpop.f32.mrb[0].mxu0
    %472 = vmatprep.mubr.bf16.mxu0 0
    %473 = vmatmul.mubr.bf16.gmra.mrb[0].mxu0 %v354
    %v474 = vpop.f32.mrb[0].mxu0
    %v475 = vadd.f32 %v382, %v474
    %v476 = vpop.f32.mrb[0].mxu0
    %v477 = vpop.f32.mrb[0].mxu0
    %v478 = vadd.f32 %v382, %v477
    %v479 = vpop.f32.mrb[0].mxu0
    %480 = vmatprep.mubr.bf16.mxu0 0
    %481 = vmatmul.mubr.bf16.gmra.mrb[0].mxu0 %v355
    %v482 = vpop.f32.mrb[0].mxu0
    %v483 = vadd.f32 %v382, %v482
    %v484 = vpop.f32.mrb[0].mxu0
    %v485 = vpop.f32.mrb[0].mxu0
    %v486 = vadd.f32 %v382, %v485
    %v487 = vpop.f32.mrb[0].mxu0
    %488 = vmatprep.mubr.bf16.mxu0 0
    %489 = vmatmul.mubr.bf16.gmra.mrb[0].mxu0 %v356
    %v490 = vpop.f32.mrb[0].mxu0
    %v491 = vadd.f32 %v382, %v490
    %v492 = vpop.f32.mrb[0].mxu0
    %v493 = vpop.f32.mrb[0].mxu0
    %v494 = vadd.f32 %v382, %v493
    %v495 = vpop.f32.mrb[0].mxu0
    %496 = vmatprep.mubr.bf16.mxu0 0
    %497 = vmatmul.mubr.bf16.gmra.mrb[0].mxu0 %v357
    %v498 = vpop.f32.mrb[0].mxu0
    %v499 = vadd.f32 %v382, %v498
    %v500 = vpop.f32.mrb[0].mxu0
    %v501 = vpop.f32.mrb[0].mxu0
    %v502 = vadd.f32 %v382, %v501
    %v503 = vpop.f32.mrb[0].mxu0
    %504 = vmatprep.mubr.bf16.mxu0 0
    %505 = vmatmul.mubr.bf16.gmra.mrb[0].mxu0 %v358
    %v506 = vpop.f32.mrb[0].mxu0
    %v507 = vadd.f32 %v382, %v506
    %v508 = vpop.f32.mrb[0].mxu0
    %v509 = vpop.f32.mrb[0].mxu0
    %v510 = vadd.f32 %v382, %v509
    %v511 = vpop.f32.mrb[0].mxu0
    %512 = vmatprep.mubr.bf16.mxu0 0
    %513 = vmatmul.mubr.bf16.gmra.mrb[0].mxu0 %v359
    %v514 = vpop.f32.mrb[0].mxu0
    %v515 = vadd.f32 %v382, %v514
    %v516 = vpop.f32.mrb[0].mxu0
    %v517 = vpop.f32.mrb[0].mxu0
    %v518 = vadd.f32 %v382, %v517
    %v519 = vpop.f32.mrb[0].mxu0
    %520 = vmatprep.mubr.bf16.mxu0 0
    %521 = vmatmul.mubr.bf16.gmra.mrb[0].mxu0 %v360
    %v522 = vpop.f32.mrb[0].mxu0
    %v523 = vadd.f32 %v382, %v522
    %v524 = vpop.f32.mrb[0].mxu0
    %v525 = vpop.f32.mrb[0].mxu0
    %v526 = vadd.f32 %v382, %v525
    %v527 = vpop.f32.mrb[0].mxu0
    %528 = vdwg.mxu0
    %v529 = vld [vmem:[%s6] sm:$0x1]
    %v530 = vld [vmem:[%s7] sm:$0x1]
    %v531 = vmul.f32 %v467, %v112
    %v532 = vmul.f32 %v470, %v113
    %v533 = vmul.f32 %v475, %v114
    %v534 = vmul.f32 %v478, %v115
    %v535 = vmul.f32 %v483, %v116
    %v536 = vmul.f32 %v486, %v117
    %v537 = vmul.f32 %v491, %v118
    %v538 = vmul.f32 %v494, %v119
    %v539 = vmul.f32 %v499, %v120
    %v540 = vmul.f32 %v502, %v121
    %v541 = vmul.f32 %v507, %v122
    %v542 = vmul.f32 %v510, %v123
    %v543 = vmul.f32 %v515, %v124
    %v544 = vmul.f32 %v518, %v125
    %v545 = vmul.f32 %v523, %v126
    %v546 = vmul.f32 %v526, %v127
    %v547 = vadd.f32 %v531, %v532
    %v548 = vadd.f32 %v547, %v533
    %v549 = vadd.f32 %v548, %v534
    %v550 = vadd.f32 %v549, %v535
    %v551 = vadd.f32 %v550, %v536
    %v552 = vadd.f32 %v551, %v537
    %v553 = vadd.f32 %v552, %v538
    %v554 = vadd.f32 %v553, %v539
    %v555 = vadd.f32 %v554, %v540
    %v556 = vadd.f32 %v555, %v541
    %v557 = vadd.f32 %v556, %v542
    %v558 = vadd.f32 %v557, %v543
    %v559 = vadd.f32 %v558, %v544
    %v560 = vadd.f32 %v559, %v545
    %v561 = vadd.f32 %v560, %v546
    %v562 = vrot.slane %v561, 4
    %v563 = vadd.f32 %v561, %v562
    %v564 = vrot.slane %v563, 2
    %v565 = vadd.f32 %v563, %v564
    %v566 = vrot.slane %v565, 1
    %v567 = vadd.f32 %v565, %v566
    %v568 = vstv %s60
    %v569 = vmul.f32 %v567, %v568
    %v570 = vmul.f32 %v531, %v467
    %v571 = vmul.f32 %v532, %v470
    %v572 = vmul.f32 %v533, %v475
    %v573 = vmul.f32 %v534, %v478
    %v574 = vmul.f32 %v535, %v483
    %v575 = vmul.f32 %v536, %v486
    %v576 = vmul.f32 %v537, %v491
    %v577 = vmul.f32 %v538, %v494
    %v578 = vmul.f32 %v539, %v499
    %v579 = vmul.f32 %v540, %v502
    %v580 = vmul.f32 %v541, %v507
    %v581 = vmul.f32 %v542, %v510
    %v582 = vmul.f32 %v543, %v515
    %v583 = vmul.f32 %v544, %v518
    %v584 = vmul.f32 %v545, %v523
    %v585 = vmul.f32 %v546, %v526
    %v586 = vadd.f32 %v570, %v571
    %v587 = vadd.f32 %v586, %v572
    %v588 = vadd.f32 %v587, %v573
    %v589 = vadd.f32 %v588, %v574
    %v590 = vadd.f32 %v589, %v575
    %v591 = vadd.f32 %v590, %v576
    %v592 = vadd.f32 %v591, %v577
    %v593 = vadd.f32 %v592, %v578
    %v594 = vadd.f32 %v593, %v579
    %v595 = vadd.f32 %v594, %v580
    %v596 = vadd.f32 %v595, %v581
    %v597 = vadd.f32 %v596, %v582
    %v598 = vadd.f32 %v597, %v583
    %v599 = vadd.f32 %v598, %v584
    %v600 = vadd.f32 %v599, %v585
    %v601 = vrot.slane %v600, 4
    %v602 = vadd.f32 %v600, %v601
    %v603 = vrot.slane %v602, 2
    %v604 = vadd.f32 %v602, %v603
    %v605 = vrot.slane %v604, 1
    %v606 = vadd.f32 %v604, %v605
    %v607 = vmul.f32 %v606, %v568
    %v608 = vmul.f32 %v569, %v569
    %v609 = vsub.f32 %v607, %v608
    %v610 = vmax.f32 %v609, 0.0
    %v611 = vsub.f32 %v467, %v569
    %v612 = vsub.f32 %v470, %v569
    %v613 = vsub.f32 %v475, %v569
    %v614 = vsub.f32 %v478, %v569
    %v615 = vsub.f32 %v483, %v569
    %v616 = vsub.f32 %v486, %v569
    %v617 = vsub.f32 %v491, %v569
    %v618 = vsub.f32 %v494, %v569
    %v619 = vsub.f32 %v499, %v569
    %v620 = vsub.f32 %v502, %v569
    %v621 = vsub.f32 %v507, %v569
    %v622 = vsub.f32 %v510, %v569
    %v623 = vsub.f32 %v515, %v569
    %v624 = vsub.f32 %v518, %v569
    %v625 = vsub.f32 %v523, %v569
    %v626 = vsub.f32 %v526, %v569
    %v627 = vadd.f32 %v610, 1e-05
    %v628 = vrsqrt.pop %v627
    %v629 = vmul.f32 %v611, %v628
    %v630 = vmul.f32 %v612, %v628
    %v631 = vmul.f32 %v613, %v628
    %v632 = vmul.f32 %v614, %v628
    %v633 = vmul.f32 %v615, %v628
    %v634 = vmul.f32 %v616, %v628
    %v635 = vmul.f32 %v617, %v628
    %v636 = vmul.f32 %v618, %v628
    %v637 = vmul.f32 %v619, %v628
    %v638 = vmul.f32 %v620, %v628
    %v639 = vmul.f32 %v621, %v628
    %v640 = vmul.f32 %v622, %v628
    %v641 = vmul.f32 %v623, %v628
    %v642 = vmul.f32 %v624, %v628
    %v643 = vmul.f32 %v625, %v628
    %v644 = vmul.f32 %v626, %v628
    %v646 = vlaneseq
    %v647 = vshrl.u32 %v646, 7
    %v648 = vsub.s32 0, %v647
    %v649 = vrot.slane %v529, %v648
    %v651 = vmul.f32 %v629, %v649
    %v652 = vmul.f32 %v630, %v649
    %v653 = vmul.f32 %v631, %v649
    %v654 = vmul.f32 %v632, %v649
    %v655 = vmul.f32 %v633, %v649
    %v656 = vmul.f32 %v634, %v649
    %v657 = vmul.f32 %v635, %v649
    %v658 = vmul.f32 %v636, %v649
    %v659 = vmul.f32 %v637, %v649
    %v660 = vmul.f32 %v638, %v649
    %v661 = vmul.f32 %v639, %v649
    %v662 = vmul.f32 %v640, %v649
    %v663 = vmul.f32 %v641, %v649
    %v664 = vmul.f32 %v642, %v649
    %v665 = vmul.f32 %v643, %v649
    %v666 = vmul.f32 %v644, %v649
    %v668 = vlaneseq
    %v669 = vshrl.u32 %v668, 7
    %v670 = vsub.s32 0, %v669
    %v671 = vrot.slane %v530, %v670
    %v673 = vadd.f32 %v651, %v671
    %v674 = vadd.f32 %v652, %v671
    %v675 = vadd.f32 %v653, %v671
    %v676 = vadd.f32 %v654, %v671
    %v677 = vadd.f32 %v655, %v671
    %v678 = vadd.f32 %v656, %v671
    %v679 = vadd.f32 %v657, %v671
    %v680 = vadd.f32 %v658, %v671
    %v681 = vadd.f32 %v659, %v671
    %v682 = vadd.f32 %v660, %v671
    %v683 = vadd.f32 %v661, %v671
    %v684 = vadd.f32 %v662, %v671
    %v685 = vadd.f32 %v663, %v671
    %v686 = vadd.f32 %v664, %v671
    %v687 = vadd.f32 %v665, %v671
    %v688 = vadd.f32 %v666, %v671
    %v689 = vmax.f32 %v673, 0.0
    %v690 = vmax.f32 %v674, 0.0
    %v691 = vmax.f32 %v675, 0.0
    %v692 = vmax.f32 %v676, 0.0
    %v693 = vmax.f32 %v677, 0.0
    %v694 = vmax.f32 %v678, 0.0
    %v695 = vmax.f32 %v679, 0.0
    %v696 = vmax.f32 %v680, 0.0
    %v697 = vmax.f32 %v681, 0.0
    %v698 = vmax.f32 %v682, 0.0
    %v699 = vmax.f32 %v683, 0.0
    %v700 = vmax.f32 %v684, 0.0
    %v701 = vmax.f32 %v685, 0.0
    %v702 = vmax.f32 %v686, 0.0
    %v703 = vmax.f32 %v687, 0.0
    %v704 = vmax.f32 %v688, 0.0
    %v705 = vmul.f32 %v689, %v112
    %v706 = vmul.f32 %v690, %v113
    %v707 = vmul.f32 %v691, %v114
    %v708 = vmul.f32 %v692, %v115
    %v709 = vmul.f32 %v693, %v116
    %v710 = vmul.f32 %v694, %v117
    %v711 = vmul.f32 %v695, %v118
    %v712 = vmul.f32 %v696, %v119
    %v713 = vmul.f32 %v697, %v120
    %v714 = vmul.f32 %v698, %v121
    %v715 = vmul.f32 %v699, %v122
    %v716 = vmul.f32 %v700, %v123
    %v717 = vmul.f32 %v701, %v124
    %v718 = vmul.f32 %v702, %v125
    %v719 = vmul.f32 %v703, %v126
    %v720 = vmul.f32 %v704, %v127
    %v721 = vpack.c.bf16 %v706, %v705
    %v722 = vpack.c.bf16 %v708, %v707
    %v723 = vpack.c.bf16 %v710, %v709
    %v724 = vpack.c.bf16 %v712, %v711
    %v725 = vpack.c.bf16 %v714, %v713
    %v726 = vpack.c.bf16 %v716, %v715
    %v727 = vpack.c.bf16 %v718, %v717
    %v728 = vpack.c.bf16 %v720, %v719
    %729 = vmatprep.subr.bf16.mxu0 0
    %730 = vmatpush1.bf16.msra.mxu0 %v721
    %731 = vmatprep.subr.bf16.mxu0 0
    %732 = vmatpush1.bf16.msra.mxu0 %v722
    %733 = vmatprep.subr.bf16.mxu0 0
    %734 = vmatpush1.bf16.msra.mxu0 %v723
    %735 = vmatprep.subr.bf16.mxu0 0
    %736 = vmatpush1.bf16.msra.mxu0 %v724
    %737 = vmatprep.subr.bf16.mxu0 0
    %738 = vmatpush1.bf16.msra.mxu0 %v725
    %739 = vmatprep.subr.bf16.mxu0 0
    %740 = vmatpush1.bf16.msra.mxu0 %v726
    %741 = vmatprep.subr.bf16.mxu0 0
    %742 = vmatpush1.bf16.msra.mxu0 %v727
    %743 = vmatprep.subr.bf16.mxu0 0
    %744 = vmatpush1.bf16.msra.mxu0 %v728
    %745 = vmatprep.subr.bf16.mxu0 0
    %746 = vmatpush1.bf16.msra.mxu0 0
    %747 = vmatprep.subr.bf16.mxu0 0
    %748 = vmatpush1.bf16.msra.mxu0 0
    %749 = vmatprep.subr.bf16.mxu0 0
    %750 = vmatpush1.bf16.msra.mxu0 0
    %751 = vmatprep.subr.bf16.mxu0 0
    %752 = vmatpush1.bf16.msra.mxu0 0
    %753 = vmatprep.subr.bf16.mxu0 0
    %754 = vmatpush1.bf16.msra.mxu0 0
    %755 = vmatprep.subr.bf16.mxu0 0
    %756 = vmatpush1.bf16.msra.mxu0 0
    %757 = vmatprep.subr.bf16.mxu0 0
    %758 = vmatpush1.bf16.msra.mxu0 0
    %759 = vmatprep.subr.bf16.mxu0 0
    %760 = vmatpush1.bf16.msra.mxu0 0
    %761 = vmatprep.mubr.bf16.mxu0 0
    %762 = vmatmul.mubr.bf16.gmra.mrb[0].mxu0 %v192
    %v763 = vpop.f32.mrb[0].mxu0
    %v764 = vadd.f32 0.0, %v763
    %v765 = vpop.f32.mrb[0].mxu0
    %v766 = vpop.f32.mrb[0].mxu0
    %v767 = vadd.f32 0.0, %v766
    %v768 = vpop.f32.mrb[0].mxu0
    %769 = vmatprep.mubr.bf16.mxu0 0
    %770 = vmatmul.mubr.bf16.gmra.mrb[0].mxu0 %v193
    %v771 = vpop.f32.mrb[0].mxu0
    %v772 = vadd.f32 0.0, %v771
    %v773 = vpop.f32.mrb[0].mxu0
    %v774 = vpop.f32.mrb[0].mxu0
    %v775 = vadd.f32 0.0, %v774
    %v776 = vpop.f32.mrb[0].mxu0
    %777 = vmatprep.mubr.bf16.mxu0 0
    %778 = vmatmul.mubr.bf16.gmra.mrb[0].mxu0 %v194
    %v779 = vpop.f32.mrb[0].mxu0
    %v780 = vadd.f32 0.0, %v779
    %v781 = vpop.f32.mrb[0].mxu0
    %v782 = vpop.f32.mrb[0].mxu0
    %v783 = vadd.f32 0.0, %v782
    %v784 = vpop.f32.mrb[0].mxu0
    %785 = vmatprep.mubr.bf16.mxu0 0
    %786 = vmatmul.mubr.bf16.gmra.mrb[0].mxu0 %v195
    %v787 = vpop.f32.mrb[0].mxu0
    %v788 = vadd.f32 0.0, %v787
    %v789 = vpop.f32.mrb[0].mxu0
    %v790 = vpop.f32.mrb[0].mxu0
    %v791 = vadd.f32 0.0, %v790
    %v792 = vpop.f32.mrb[0].mxu0
    %793 = vmatprep.mubr.bf16.mxu0 0
    %794 = vmatmul.mubr.bf16.gmra.mrb[0].mxu0 %v196
    %v795 = vpop.f32.mrb[0].mxu0
    %v796 = vadd.f32 0.0, %v795
    %v797 = vpop.f32.mrb[0].mxu0
    %v798 = vpop.f32.mrb[0].mxu0
    %v799 = vadd.f32 0.0, %v798
    %v800 = vpop.f32.mrb[0].mxu0
    %801 = vmatprep.mubr.bf16.mxu0 0
    %802 = vmatmul.mubr.bf16.gmra.mrb[0].mxu0 %v197
    %v803 = vpop.f32.mrb[0].mxu0
    %v804 = vadd.f32 0.0, %v803
    %v805 = vpop.f32.mrb[0].mxu0
    %v806 = vpop.f32.mrb[0].mxu0
    %v807 = vadd.f32 0.0, %v806
    %v808 = vpop.f32.mrb[0].mxu0
    %809 = vmatprep.mubr.bf16.mxu0 0
    %810 = vmatmul.mubr.bf16.gmra.mrb[0].mxu0 %v198
    %v811 = vpop.f32.mrb[0].mxu0
    %v812 = vadd.f32 0.0, %v811
    %v813 = vpop.f32.mrb[0].mxu0
    %v814 = vpop.f32.mrb[0].mxu0
    %v815 = vadd.f32 0.0, %v814
    %v816 = vpop.f32.mrb[0].mxu0
    %817 = vmatprep.mubr.bf16.mxu0 0
    %818 = vmatmul.mubr.bf16.gmra.mrb[0].mxu0 %v199
    %v819 = vpop.f32.mrb[0].mxu0
    %v820 = vadd.f32 0.0, %v819
    %v821 = vpop.f32.mrb[0].mxu0
    %v822 = vpop.f32.mrb[0].mxu0
    %v823 = vadd.f32 0.0, %v822
    %v824 = vpop.f32.mrb[0].mxu0
    %825 = vdwg.mxu0
    %v826 = vpack.c.bf16 %v767, %v764
    %v827 = vpack.c.bf16 %v775, %v772
    %v828 = vpack.c.bf16 %v783, %v780
    %v829 = vpack.c.bf16 %v791, %v788
    %v830 = vpack.c.bf16 %v799, %v796
    %v831 = vpack.c.bf16 %v807, %v804
    %v832 = vpack.c.bf16 %v815, %v812
    %v833 = vpack.c.bf16 %v823, %v820
    %v834 = vld [vmem:[%s8] sm:$0xf]
    %v835 = vld [vmem:[%s8 + $0x4] sm:$0xf]
    %v836 = vld [vmem:[%s8 + $0x8] sm:$0xf]
    %v837 = vld [vmem:[%s8 + $0xc] sm:$0xf]
    %v838 = vld [vmem:[%s8 + $0x10] sm:$0xf]
    %v839 = vld [vmem:[%s8 + $0x14] sm:$0xf]
    %v840 = vld [vmem:[%s8 + $0x18] sm:$0xf]
    %v841 = vld [vmem:[%s8 + $0x1c] sm:$0xf]
    %v842 = vld [vmem:[%s8 + $0x20] sm:$0xf]
    %v843 = vld [vmem:[%s8 + $0x24] sm:$0xf]
    %v844 = vld [vmem:[%s8 + $0x28] sm:$0xf]
    %v845 = vld [vmem:[%s8 + $0x2c] sm:$0xf]
    %v846 = vld [vmem:[%s8 + $0x30] sm:$0xf]
    %v847 = vld [vmem:[%s8 + $0x34] sm:$0xf]
    %v848 = vld [vmem:[%s8 + $0x38] sm:$0xf]
    %v849 = vld [vmem:[%s8 + $0x3c] sm:$0xf]
    %v850 = vld [vmem:[%s9] sm:$0x1]
    %v852 = vlaneseq
    %v853 = vshrl.u32 %v852, 7
    %v854 = vsub.s32 0, %v853
    %v855 = vrot.slane %v850, %v854
    %v873 = vunpack.c.l.b16 %v834
    %v874 = vunpack.c.l.b16 %v835
    %v875 = vunpack.c.l.b16 %v836
    %v876 = vunpack.c.l.b16 %v837
    %v877 = vunpack.c.l.b16 %v838
    %v878 = vunpack.c.l.b16 %v839
    %v879 = vunpack.c.l.b16 %v840
    %v880 = vunpack.c.l.b16 %v841
    %v881 = vunpack.c.l.b16 %v842
    %v882 = vunpack.c.l.b16 %v843
    %v883 = vunpack.c.l.b16 %v844
    %v884 = vunpack.c.l.b16 %v845
    %v885 = vunpack.c.l.b16 %v846
    %v886 = vunpack.c.l.b16 %v847
    %v887 = vunpack.c.l.b16 %v848
    %v888 = vunpack.c.l.b16 %v849
    %v889 = vpack.c.b16 %v874, %v873
    %v890 = vpack.c.b16 %v876, %v875
    %v891 = vpack.c.b16 %v878, %v877
    %v892 = vpack.c.b16 %v880, %v879
    %v893 = vpack.c.b16 %v882, %v881
    %v894 = vpack.c.b16 %v884, %v883
    %v895 = vpack.c.b16 %v886, %v885
    %v896 = vpack.c.b16 %v888, %v887
    %905 = vmatprep.subr.bf16.mxu0 0
    %906 = vmatpush1.bf16.msra.mxu0 %v889
    %907 = vmatprep.subr.bf16.mxu0 0
    %908 = vmatpush1.bf16.msra.mxu0 %v890
    %909 = vmatprep.subr.bf16.mxu0 0
    %910 = vmatpush1.bf16.msra.mxu0 %v891
    %911 = vmatprep.subr.bf16.mxu0 0
    %912 = vmatpush1.bf16.msra.mxu0 %v892
    %913 = vmatprep.subr.bf16.mxu0 0
    %914 = vmatpush1.bf16.msra.mxu0 %v893
    %915 = vmatprep.subr.bf16.mxu0 0
    %916 = vmatpush1.bf16.msra.mxu0 %v894
    %917 = vmatprep.subr.bf16.mxu0 0
    %918 = vmatpush1.bf16.msra.mxu0 %v895
    %919 = vmatprep.subr.bf16.mxu0 0
    %920 = vmatpush1.bf16.msra.mxu0 %v896
    %921 = vmatprep.subr.bf16.mxu0 0
    %922 = vmatpush1.bf16.msra.mxu0 0
    %923 = vmatprep.subr.bf16.mxu0 0
    %924 = vmatpush1.bf16.msra.mxu0 0
    %925 = vmatprep.subr.bf16.mxu0 0
    %926 = vmatpush1.bf16.msra.mxu0 0
    %927 = vmatprep.subr.bf16.mxu0 0
    %928 = vmatpush1.bf16.msra.mxu0 0
    %929 = vmatprep.subr.bf16.mxu0 0
    %930 = vmatpush1.bf16.msra.mxu0 0
    %931 = vmatprep.subr.bf16.mxu0 0
    %932 = vmatpush1.bf16.msra.mxu0 0
    %933 = vmatprep.subr.bf16.mxu0 0
    %934 = vmatpush1.bf16.msra.mxu0 0
    %935 = vmatprep.subr.bf16.mxu0 0
    %936 = vmatpush1.bf16.msra.mxu0 0
    %937 = vmatprep.mubr.bf16.mxu0 0
    %938 = vmatmul.mubr.bf16.gmra.mrb[0].mxu0 %v826
    %v939 = vpop.f32.mrb[0].mxu0
    %v940 = vadd.f32 %v855, %v939
    %v941 = vpop.f32.mrb[0].mxu0
    %v942 = vpop.f32.mrb[0].mxu0
    %v943 = vadd.f32 %v855, %v942
    %v944 = vpop.f32.mrb[0].mxu0
    %945 = vmatprep.mubr.bf16.mxu0 0
    %946 = vmatmul.mubr.bf16.gmra.mrb[0].mxu0 %v827
    %v947 = vpop.f32.mrb[0].mxu0
    %v948 = vadd.f32 %v855, %v947
    %v949 = vpop.f32.mrb[0].mxu0
    %v950 = vpop.f32.mrb[0].mxu0
    %v951 = vadd.f32 %v855, %v950
    %v952 = vpop.f32.mrb[0].mxu0
    %953 = vmatprep.mubr.bf16.mxu0 0
    %954 = vmatmul.mubr.bf16.gmra.mrb[0].mxu0 %v828
    %v955 = vpop.f32.mrb[0].mxu0
    %v956 = vadd.f32 %v855, %v955
    %v957 = vpop.f32.mrb[0].mxu0
    %v958 = vpop.f32.mrb[0].mxu0
    %v959 = vadd.f32 %v855, %v958
    %v960 = vpop.f32.mrb[0].mxu0
    %961 = vmatprep.mubr.bf16.mxu0 0
    %962 = vmatmul.mubr.bf16.gmra.mrb[0].mxu0 %v829
    %v963 = vpop.f32.mrb[0].mxu0
    %v964 = vadd.f32 %v855, %v963
    %v965 = vpop.f32.mrb[0].mxu0
    %v966 = vpop.f32.mrb[0].mxu0
    %v967 = vadd.f32 %v855, %v966
    %v968 = vpop.f32.mrb[0].mxu0
    %969 = vmatprep.mubr.bf16.mxu0 0
    %970 = vmatmul.mubr.bf16.gmra.mrb[0].mxu0 %v830
    %v971 = vpop.f32.mrb[0].mxu0
    %v972 = vadd.f32 %v855, %v971
    %v973 = vpop.f32.mrb[0].mxu0
    %v974 = vpop.f32.mrb[0].mxu0
    %v975 = vadd.f32 %v855, %v974
    %v976 = vpop.f32.mrb[0].mxu0
    %977 = vmatprep.mubr.bf16.mxu0 0
    %978 = vmatmul.mubr.bf16.gmra.mrb[0].mxu0 %v831
    %v979 = vpop.f32.mrb[0].mxu0
    %v980 = vadd.f32 %v855, %v979
    %v981 = vpop.f32.mrb[0].mxu0
    %v982 = vpop.f32.mrb[0].mxu0
    %v983 = vadd.f32 %v855, %v982
    %v984 = vpop.f32.mrb[0].mxu0
    %985 = vmatprep.mubr.bf16.mxu0 0
    %986 = vmatmul.mubr.bf16.gmra.mrb[0].mxu0 %v832
    %v987 = vpop.f32.mrb[0].mxu0
    %v988 = vadd.f32 %v855, %v987
    %v989 = vpop.f32.mrb[0].mxu0
    %v990 = vpop.f32.mrb[0].mxu0
    %v991 = vadd.f32 %v855, %v990
    %v992 = vpop.f32.mrb[0].mxu0
    %993 = vmatprep.mubr.bf16.mxu0 0
    %994 = vmatmul.mubr.bf16.gmra.mrb[0].mxu0 %v833
    %v995 = vpop.f32.mrb[0].mxu0
    %v996 = vadd.f32 %v855, %v995
    %v997 = vpop.f32.mrb[0].mxu0
    %v998 = vpop.f32.mrb[0].mxu0
    %v999 = vadd.f32 %v855, %v998
    %v1000 = vpop.f32.mrb[0].mxu0
    %1001 = vdwg.mxu0
    %v1002 = vld [vmem:[%s10] sm:$0x1]
    %v1003 = vld [vmem:[%s11] sm:$0x1]
    %v1004 = vmul.f32 %v940, %v112
    %v1005 = vmul.f32 %v943, %v113
    %v1006 = vmul.f32 %v948, %v114
    %v1007 = vmul.f32 %v951, %v115
    %v1008 = vmul.f32 %v956, %v116
    %v1009 = vmul.f32 %v959, %v117
    %v1010 = vmul.f32 %v964, %v118
    %v1011 = vmul.f32 %v967, %v119
    %v1012 = vmul.f32 %v972, %v120
    %v1013 = vmul.f32 %v975, %v121
    %v1014 = vmul.f32 %v980, %v122
    %v1015 = vmul.f32 %v983, %v123
    %v1016 = vmul.f32 %v988, %v124
    %v1017 = vmul.f32 %v991, %v125
    %v1018 = vmul.f32 %v996, %v126
    %v1019 = vmul.f32 %v999, %v127
    %v1020 = vadd.f32 %v1004, %v1005
    %v1021 = vadd.f32 %v1020, %v1006
    %v1022 = vadd.f32 %v1021, %v1007
    %v1023 = vadd.f32 %v1022, %v1008
    %v1024 = vadd.f32 %v1023, %v1009
    %v1025 = vadd.f32 %v1024, %v1010
    %v1026 = vadd.f32 %v1025, %v1011
    %v1027 = vadd.f32 %v1026, %v1012
    %v1028 = vadd.f32 %v1027, %v1013
    %v1029 = vadd.f32 %v1028, %v1014
    %v1030 = vadd.f32 %v1029, %v1015
    %v1031 = vadd.f32 %v1030, %v1016
    %v1032 = vadd.f32 %v1031, %v1017
    %v1033 = vadd.f32 %v1032, %v1018
    %v1034 = vadd.f32 %v1033, %v1019
    %v1035 = vrot.slane %v1034, 4
    %v1036 = vadd.f32 %v1034, %v1035
    %v1037 = vrot.slane %v1036, 2
    %v1038 = vadd.f32 %v1036, %v1037
    %v1039 = vrot.slane %v1038, 1
    %v1040 = vadd.f32 %v1038, %v1039
    %v1041 = vmul.f32 %v1040, %v568
    %v1042 = vmul.f32 %v1004, %v940
    %v1043 = vmul.f32 %v1005, %v943
    %v1044 = vmul.f32 %v1006, %v948
    %v1045 = vmul.f32 %v1007, %v951
    %v1046 = vmul.f32 %v1008, %v956
    %v1047 = vmul.f32 %v1009, %v959
    %v1048 = vmul.f32 %v1010, %v964
    %v1049 = vmul.f32 %v1011, %v967
    %v1050 = vmul.f32 %v1012, %v972
    %v1051 = vmul.f32 %v1013, %v975
    %v1052 = vmul.f32 %v1014, %v980
    %v1053 = vmul.f32 %v1015, %v983
    %v1054 = vmul.f32 %v1016, %v988
    %v1055 = vmul.f32 %v1017, %v991
    %v1056 = vmul.f32 %v1018, %v996
    %v1057 = vmul.f32 %v1019, %v999
    %v1058 = vadd.f32 %v1042, %v1043
    %v1059 = vadd.f32 %v1058, %v1044
    %v1060 = vadd.f32 %v1059, %v1045
    %v1061 = vadd.f32 %v1060, %v1046
    %v1062 = vadd.f32 %v1061, %v1047
    %v1063 = vadd.f32 %v1062, %v1048
    %v1064 = vadd.f32 %v1063, %v1049
    %v1065 = vadd.f32 %v1064, %v1050
    %v1066 = vadd.f32 %v1065, %v1051
    %v1067 = vadd.f32 %v1066, %v1052
    %v1068 = vadd.f32 %v1067, %v1053
    %v1069 = vadd.f32 %v1068, %v1054
    %v1070 = vadd.f32 %v1069, %v1055
    %v1071 = vadd.f32 %v1070, %v1056
    %v1072 = vadd.f32 %v1071, %v1057
    %v1073 = vrot.slane %v1072, 4
    %v1074 = vadd.f32 %v1072, %v1073
    %v1075 = vrot.slane %v1074, 2
    %v1076 = vadd.f32 %v1074, %v1075
    %v1077 = vrot.slane %v1076, 1
    %v1078 = vadd.f32 %v1076, %v1077
    %v1079 = vmul.f32 %v1078, %v568
    %v1080 = vmul.f32 %v1041, %v1041
    %v1081 = vsub.f32 %v1079, %v1080
    %v1082 = vmax.f32 %v1081, 0.0
    %v1083 = vsub.f32 %v940, %v1041
    %v1084 = vsub.f32 %v943, %v1041
    %v1085 = vsub.f32 %v948, %v1041
    %v1086 = vsub.f32 %v951, %v1041
    %v1087 = vsub.f32 %v956, %v1041
    %v1088 = vsub.f32 %v959, %v1041
    %v1089 = vsub.f32 %v964, %v1041
    %v1090 = vsub.f32 %v967, %v1041
    %v1091 = vsub.f32 %v972, %v1041
    %v1092 = vsub.f32 %v975, %v1041
    %v1093 = vsub.f32 %v980, %v1041
    %v1094 = vsub.f32 %v983, %v1041
    %v1095 = vsub.f32 %v988, %v1041
    %v1096 = vsub.f32 %v991, %v1041
    %v1097 = vsub.f32 %v996, %v1041
    %v1098 = vsub.f32 %v999, %v1041
    %v1099 = vadd.f32 %v1082, 1e-05
    %v1100 = vrsqrt.pop %v1099
    %v1101 = vmul.f32 %v1083, %v1100
    %v1102 = vmul.f32 %v1084, %v1100
    %v1103 = vmul.f32 %v1085, %v1100
    %v1104 = vmul.f32 %v1086, %v1100
    %v1105 = vmul.f32 %v1087, %v1100
    %v1106 = vmul.f32 %v1088, %v1100
    %v1107 = vmul.f32 %v1089, %v1100
    %v1108 = vmul.f32 %v1090, %v1100
    %v1109 = vmul.f32 %v1091, %v1100
    %v1110 = vmul.f32 %v1092, %v1100
    %v1111 = vmul.f32 %v1093, %v1100
    %v1112 = vmul.f32 %v1094, %v1100
    %v1113 = vmul.f32 %v1095, %v1100
    %v1114 = vmul.f32 %v1096, %v1100
    %v1115 = vmul.f32 %v1097, %v1100
    %v1116 = vmul.f32 %v1098, %v1100
    %v1118 = vlaneseq
    %v1119 = vshrl.u32 %v1118, 7
    %v1120 = vsub.s32 0, %v1119
    %v1121 = vrot.slane %v1002, %v1120
    %v1123 = vmul.f32 %v1101, %v1121
    %v1124 = vmul.f32 %v1102, %v1121
    %v1125 = vmul.f32 %v1103, %v1121
    %v1126 = vmul.f32 %v1104, %v1121
    %v1127 = vmul.f32 %v1105, %v1121
    %v1128 = vmul.f32 %v1106, %v1121
    %v1129 = vmul.f32 %v1107, %v1121
    %v1130 = vmul.f32 %v1108, %v1121
    %v1131 = vmul.f32 %v1109, %v1121
    %v1132 = vmul.f32 %v1110, %v1121
    %v1133 = vmul.f32 %v1111, %v1121
    %v1134 = vmul.f32 %v1112, %v1121
    %v1135 = vmul.f32 %v1113, %v1121
    %v1136 = vmul.f32 %v1114, %v1121
    %v1137 = vmul.f32 %v1115, %v1121
    %v1138 = vmul.f32 %v1116, %v1121
    %v1140 = vlaneseq
    %v1141 = vshrl.u32 %v1140, 7
    %v1142 = vsub.s32 0, %v1141
    %v1143 = vrot.slane %v1003, %v1142
    %v1145 = vadd.f32 %v1123, %v1143
    %v1146 = vadd.f32 %v1124, %v1143
    %v1147 = vadd.f32 %v1125, %v1143
    %v1148 = vadd.f32 %v1126, %v1143
    %v1149 = vadd.f32 %v1127, %v1143
    %v1150 = vadd.f32 %v1128, %v1143
    %v1151 = vadd.f32 %v1129, %v1143
    %v1152 = vadd.f32 %v1130, %v1143
    %v1153 = vadd.f32 %v1131, %v1143
    %v1154 = vadd.f32 %v1132, %v1143
    %v1155 = vadd.f32 %v1133, %v1143
    %v1156 = vadd.f32 %v1134, %v1143
    %v1157 = vadd.f32 %v1135, %v1143
    %v1158 = vadd.f32 %v1136, %v1143
    %v1159 = vadd.f32 %v1137, %v1143
    %v1160 = vadd.f32 %v1138, %v1143
    %v1161 = vmax.f32 %v1145, 0.0
    %v1162 = vmax.f32 %v1146, 0.0
    %v1163 = vmax.f32 %v1147, 0.0
    %v1164 = vmax.f32 %v1148, 0.0
    %v1165 = vmax.f32 %v1149, 0.0
    %v1166 = vmax.f32 %v1150, 0.0
    %v1167 = vmax.f32 %v1151, 0.0
    %v1168 = vmax.f32 %v1152, 0.0
    %v1169 = vmax.f32 %v1153, 0.0
    %v1170 = vmax.f32 %v1154, 0.0
    %v1171 = vmax.f32 %v1155, 0.0
    %v1172 = vmax.f32 %v1156, 0.0
    %v1173 = vmax.f32 %v1157, 0.0
    %v1174 = vmax.f32 %v1158, 0.0
    %v1175 = vmax.f32 %v1159, 0.0
    %v1176 = vmax.f32 %v1160, 0.0
    %v1177 = vmul.f32 %v1161, %v112
    %v1178 = vmul.f32 %v1162, %v113
    %v1179 = vmul.f32 %v1163, %v114
    %v1180 = vmul.f32 %v1164, %v115
    %v1181 = vmul.f32 %v1165, %v116
    %v1182 = vmul.f32 %v1166, %v117
    %v1183 = vmul.f32 %v1167, %v118
    %v1184 = vmul.f32 %v1168, %v119
    %v1185 = vmul.f32 %v1169, %v120
    %v1186 = vmul.f32 %v1170, %v121
    %v1187 = vmul.f32 %v1171, %v122
    %v1188 = vmul.f32 %v1172, %v123
    %v1189 = vmul.f32 %v1173, %v124
    %v1190 = vmul.f32 %v1174, %v125
    %v1191 = vmul.f32 %v1175, %v126
    %v1192 = vmul.f32 %v1176, %v127
    %v1193 = vpack.c.bf16 %v1178, %v1177
    %v1194 = vpack.c.bf16 %v1180, %v1179
    %v1195 = vpack.c.bf16 %v1182, %v1181
    %v1196 = vpack.c.bf16 %v1184, %v1183
    %v1197 = vpack.c.bf16 %v1186, %v1185
    %v1198 = vpack.c.bf16 %v1188, %v1187
    %v1199 = vpack.c.bf16 %v1190, %v1189
    %v1200 = vpack.c.bf16 %v1192, %v1191
    %1201 = vmatprep.subr.bf16.mxu0 0
    %1202 = vmatpush1.bf16.msra.mxu0 %v1193
    %1203 = vmatprep.subr.bf16.mxu0 0
    %1204 = vmatpush1.bf16.msra.mxu0 %v1194
    %1205 = vmatprep.subr.bf16.mxu0 0
    %1206 = vmatpush1.bf16.msra.mxu0 %v1195
    %1207 = vmatprep.subr.bf16.mxu0 0
    %1208 = vmatpush1.bf16.msra.mxu0 %v1196
    %1209 = vmatprep.subr.bf16.mxu0 0
    %1210 = vmatpush1.bf16.msra.mxu0 %v1197
    %1211 = vmatprep.subr.bf16.mxu0 0
    %1212 = vmatpush1.bf16.msra.mxu0 %v1198
    %1213 = vmatprep.subr.bf16.mxu0 0
    %1214 = vmatpush1.bf16.msra.mxu0 %v1199
    %1215 = vmatprep.subr.bf16.mxu0 0
    %1216 = vmatpush1.bf16.msra.mxu0 %v1200
    %1217 = vmatprep.subr.bf16.mxu0 0
    %1218 = vmatpush1.bf16.msra.mxu0 0
    %1219 = vmatprep.subr.bf16.mxu0 0
    %1220 = vmatpush1.bf16.msra.mxu0 0
    %1221 = vmatprep.subr.bf16.mxu0 0
    %1222 = vmatpush1.bf16.msra.mxu0 0
    %1223 = vmatprep.subr.bf16.mxu0 0
    %1224 = vmatpush1.bf16.msra.mxu0 0
    %1225 = vmatprep.subr.bf16.mxu0 0
    %1226 = vmatpush1.bf16.msra.mxu0 0
    %1227 = vmatprep.subr.bf16.mxu0 0
    %1228 = vmatpush1.bf16.msra.mxu0 0
    %1229 = vmatprep.subr.bf16.mxu0 0
    %1230 = vmatpush1.bf16.msra.mxu0 0
    %1231 = vmatprep.subr.bf16.mxu0 0
    %1232 = vmatpush1.bf16.msra.mxu0 0
    %1233 = vmatprep.mubr.bf16.mxu0 0
    %1234 = vmatmul.mubr.bf16.gmra.mrb[0].mxu0 %v192
    %v1235 = vpop.f32.mrb[0].mxu0
    %v1236 = vadd.f32 0.0, %v1235
    %v1237 = vpop.f32.mrb[0].mxu0
    %v1238 = vpop.f32.mrb[0].mxu0
    %v1239 = vadd.f32 0.0, %v1238
    %v1240 = vpop.f32.mrb[0].mxu0
    %1241 = vmatprep.mubr.bf16.mxu0 0
    %1242 = vmatmul.mubr.bf16.gmra.mrb[0].mxu0 %v193
    %v1243 = vpop.f32.mrb[0].mxu0
    %v1244 = vadd.f32 0.0, %v1243
    %v1245 = vpop.f32.mrb[0].mxu0
    %v1246 = vpop.f32.mrb[0].mxu0
    %v1247 = vadd.f32 0.0, %v1246
    %v1248 = vpop.f32.mrb[0].mxu0
    %1249 = vmatprep.mubr.bf16.mxu0 0
    %1250 = vmatmul.mubr.bf16.gmra.mrb[0].mxu0 %v194
    %v1251 = vpop.f32.mrb[0].mxu0
    %v1252 = vadd.f32 0.0, %v1251
    %v1253 = vpop.f32.mrb[0].mxu0
    %v1254 = vpop.f32.mrb[0].mxu0
    %v1255 = vadd.f32 0.0, %v1254
    %v1256 = vpop.f32.mrb[0].mxu0
    %1257 = vmatprep.mubr.bf16.mxu0 0
    %1258 = vmatmul.mubr.bf16.gmra.mrb[0].mxu0 %v195
    %v1259 = vpop.f32.mrb[0].mxu0
    %v1260 = vadd.f32 0.0, %v1259
    %v1261 = vpop.f32.mrb[0].mxu0
    %v1262 = vpop.f32.mrb[0].mxu0
    %v1263 = vadd.f32 0.0, %v1262
    %v1264 = vpop.f32.mrb[0].mxu0
    %1265 = vmatprep.mubr.bf16.mxu0 0
    %1266 = vmatmul.mubr.bf16.gmra.mrb[0].mxu0 %v196
    %v1267 = vpop.f32.mrb[0].mxu0
    %v1268 = vadd.f32 0.0, %v1267
    %v1269 = vpop.f32.mrb[0].mxu0
    %v1270 = vpop.f32.mrb[0].mxu0
    %v1271 = vadd.f32 0.0, %v1270
    %v1272 = vpop.f32.mrb[0].mxu0
    %1273 = vmatprep.mubr.bf16.mxu0 0
    %1274 = vmatmul.mubr.bf16.gmra.mrb[0].mxu0 %v197
    %v1275 = vpop.f32.mrb[0].mxu0
    %v1276 = vadd.f32 0.0, %v1275
    %v1277 = vpop.f32.mrb[0].mxu0
    %v1278 = vpop.f32.mrb[0].mxu0
    %v1279 = vadd.f32 0.0, %v1278
    %v1280 = vpop.f32.mrb[0].mxu0
    %1281 = vmatprep.mubr.bf16.mxu0 0
    %1282 = vmatmul.mubr.bf16.gmra.mrb[0].mxu0 %v198
    %v1283 = vpop.f32.mrb[0].mxu0
    %v1284 = vadd.f32 0.0, %v1283
    %v1285 = vpop.f32.mrb[0].mxu0
    %v1286 = vpop.f32.mrb[0].mxu0
    %v1287 = vadd.f32 0.0, %v1286
    %v1288 = vpop.f32.mrb[0].mxu0
    %1289 = vmatprep.mubr.bf16.mxu0 0
    %1290 = vmatmul.mubr.bf16.gmra.mrb[0].mxu0 %v199
    %v1291 = vpop.f32.mrb[0].mxu0
    %v1292 = vadd.f32 0.0, %v1291
    %v1293 = vpop.f32.mrb[0].mxu0
    %v1294 = vpop.f32.mrb[0].mxu0
    %v1295 = vadd.f32 0.0, %v1294
    %v1296 = vpop.f32.mrb[0].mxu0
    %1297 = vdwg.mxu0
    %v1298 = vpack.c.bf16 %v1239, %v1236
    %v1299 = vpack.c.bf16 %v1247, %v1244
    %v1300 = vpack.c.bf16 %v1255, %v1252
    %v1301 = vpack.c.bf16 %v1263, %v1260
    %v1302 = vpack.c.bf16 %v1271, %v1268
    %v1303 = vpack.c.bf16 %v1279, %v1276
    %v1304 = vpack.c.bf16 %v1287, %v1284
    %v1305 = vpack.c.bf16 %v1295, %v1292
    %v1306 = vld [vmem:[%s12] sm:$0xf]
    %v1307 = vld [vmem:[%s12 + $0x4] sm:$0xf]
    %v1308 = vld [vmem:[%s12 + $0x8] sm:$0xf]
    %v1309 = vld [vmem:[%s12 + $0xc] sm:$0xf]
    %v1310 = vld [vmem:[%s12 + $0x10] sm:$0xf]
    %v1311 = vld [vmem:[%s12 + $0x14] sm:$0xf]
    %v1312 = vld [vmem:[%s12 + $0x18] sm:$0xf]
    %v1313 = vld [vmem:[%s12 + $0x1c] sm:$0xf]
    %v1314 = vld [vmem:[%s12 + $0x20] sm:$0xf]
    %v1315 = vld [vmem:[%s12 + $0x24] sm:$0xf]
    %v1316 = vld [vmem:[%s12 + $0x28] sm:$0xf]
    %v1317 = vld [vmem:[%s12 + $0x2c] sm:$0xf]
    %v1318 = vld [vmem:[%s12 + $0x30] sm:$0xf]
    %v1319 = vld [vmem:[%s12 + $0x34] sm:$0xf]
    %v1320 = vld [vmem:[%s12 + $0x38] sm:$0xf]
    %v1321 = vld [vmem:[%s12 + $0x3c] sm:$0xf]
    %v1322 = vld [vmem:[%s13] sm:$0x1]
    %v1324 = vlaneseq
    %v1325 = vshrl.u32 %v1324, 7
    %v1326 = vsub.s32 0, %v1325
    %v1327 = vrot.slane %v1322, %v1326
    %v1345 = vunpack.c.l.b16 %v1306
    %v1346 = vunpack.c.l.b16 %v1307
    %v1347 = vunpack.c.l.b16 %v1308
    %v1348 = vunpack.c.l.b16 %v1309
    %v1349 = vunpack.c.l.b16 %v1310
    %v1350 = vunpack.c.l.b16 %v1311
    %v1351 = vunpack.c.l.b16 %v1312
    %v1352 = vunpack.c.l.b16 %v1313
    %v1353 = vunpack.c.l.b16 %v1314
    %v1354 = vunpack.c.l.b16 %v1315
    %v1355 = vunpack.c.l.b16 %v1316
    %v1356 = vunpack.c.l.b16 %v1317
    %v1357 = vunpack.c.l.b16 %v1318
    %v1358 = vunpack.c.l.b16 %v1319
    %v1359 = vunpack.c.l.b16 %v1320
    %v1360 = vunpack.c.l.b16 %v1321
    %v1361 = vpack.c.b16 %v1346, %v1345
    %v1362 = vpack.c.b16 %v1348, %v1347
    %v1363 = vpack.c.b16 %v1350, %v1349
    %v1364 = vpack.c.b16 %v1352, %v1351
    %v1365 = vpack.c.b16 %v1354, %v1353
    %v1366 = vpack.c.b16 %v1356, %v1355
    %v1367 = vpack.c.b16 %v1358, %v1357
    %v1368 = vpack.c.b16 %v1360, %v1359
    %1377 = vmatprep.subr.bf16.mxu0 0
    %1378 = vmatpush1.bf16.msra.mxu0 %v1361
    %1379 = vmatprep.subr.bf16.mxu0 0
    %1380 = vmatpush1.bf16.msra.mxu0 %v1362
    %1381 = vmatprep.subr.bf16.mxu0 0
    %1382 = vmatpush1.bf16.msra.mxu0 %v1363
    %1383 = vmatprep.subr.bf16.mxu0 0
    %1384 = vmatpush1.bf16.msra.mxu0 %v1364
    %1385 = vmatprep.subr.bf16.mxu0 0
    %1386 = vmatpush1.bf16.msra.mxu0 %v1365
    %1387 = vmatprep.subr.bf16.mxu0 0
    %1388 = vmatpush1.bf16.msra.mxu0 %v1366
    %1389 = vmatprep.subr.bf16.mxu0 0
    %1390 = vmatpush1.bf16.msra.mxu0 %v1367
    %1391 = vmatprep.subr.bf16.mxu0 0
    %1392 = vmatpush1.bf16.msra.mxu0 %v1368
    %1393 = vmatprep.subr.bf16.mxu0 0
    %1394 = vmatpush1.bf16.msra.mxu0 0
    %1395 = vmatprep.subr.bf16.mxu0 0
    %1396 = vmatpush1.bf16.msra.mxu0 0
    %1397 = vmatprep.subr.bf16.mxu0 0
    %1398 = vmatpush1.bf16.msra.mxu0 0
    %1399 = vmatprep.subr.bf16.mxu0 0
    %1400 = vmatpush1.bf16.msra.mxu0 0
    %1401 = vmatprep.subr.bf16.mxu0 0
    %1402 = vmatpush1.bf16.msra.mxu0 0
    %1403 = vmatprep.subr.bf16.mxu0 0
    %1404 = vmatpush1.bf16.msra.mxu0 0
    %1405 = vmatprep.subr.bf16.mxu0 0
    %1406 = vmatpush1.bf16.msra.mxu0 0
    %1407 = vmatprep.subr.bf16.mxu0 0
    %1408 = vmatpush1.bf16.msra.mxu0 0
    %1409 = vmatprep.mubr.bf16.mxu0 0
    %1410 = vmatmul.mubr.bf16.gmra.mrb[0].mxu0 %v1298
    %v1411 = vpop.f32.mrb[0].mxu0
    %v1412 = vadd.f32 %v1327, %v1411
    %v1413 = vpop.f32.mrb[0].mxu0
    %v1414 = vpop.f32.mrb[0].mxu0
    %v1415 = vadd.f32 %v1327, %v1414
    %v1416 = vpop.f32.mrb[0].mxu0
    %1417 = vmatprep.mubr.bf16.mxu0 0
    %1418 = vmatmul.mubr.bf16.gmra.mrb[0].mxu0 %v1299
    %v1419 = vpop.f32.mrb[0].mxu0
    %v1420 = vadd.f32 %v1327, %v1419
    %v1421 = vpop.f32.mrb[0].mxu0
    %v1422 = vpop.f32.mrb[0].mxu0
    %v1423 = vadd.f32 %v1327, %v1422
    %v1424 = vpop.f32.mrb[0].mxu0
    %1425 = vmatprep.mubr.bf16.mxu0 0
    %1426 = vmatmul.mubr.bf16.gmra.mrb[0].mxu0 %v1300
    %v1427 = vpop.f32.mrb[0].mxu0
    %v1428 = vadd.f32 %v1327, %v1427
    %v1429 = vpop.f32.mrb[0].mxu0
    %v1430 = vpop.f32.mrb[0].mxu0
    %v1431 = vadd.f32 %v1327, %v1430
    %v1432 = vpop.f32.mrb[0].mxu0
    %1433 = vmatprep.mubr.bf16.mxu0 0
    %1434 = vmatmul.mubr.bf16.gmra.mrb[0].mxu0 %v1301
    %v1435 = vpop.f32.mrb[0].mxu0
    %v1436 = vadd.f32 %v1327, %v1435
    %v1437 = vpop.f32.mrb[0].mxu0
    %v1438 = vpop.f32.mrb[0].mxu0
    %v1439 = vadd.f32 %v1327, %v1438
    %v1440 = vpop.f32.mrb[0].mxu0
    %1441 = vmatprep.mubr.bf16.mxu0 0
    %1442 = vmatmul.mubr.bf16.gmra.mrb[0].mxu0 %v1302
    %v1443 = vpop.f32.mrb[0].mxu0
    %v1444 = vadd.f32 %v1327, %v1443
    %v1445 = vpop.f32.mrb[0].mxu0
    %v1446 = vpop.f32.mrb[0].mxu0
    %v1447 = vadd.f32 %v1327, %v1446
    %v1448 = vpop.f32.mrb[0].mxu0
    %1449 = vmatprep.mubr.bf16.mxu0 0
    %1450 = vmatmul.mubr.bf16.gmra.mrb[0].mxu0 %v1303
    %v1451 = vpop.f32.mrb[0].mxu0
    %v1452 = vadd.f32 %v1327, %v1451
    %v1453 = vpop.f32.mrb[0].mxu0
    %v1454 = vpop.f32.mrb[0].mxu0
    %v1455 = vadd.f32 %v1327, %v1454
    %v1456 = vpop.f32.mrb[0].mxu0
    %1457 = vmatprep.mubr.bf16.mxu0 0
    %1458 = vmatmul.mubr.bf16.gmra.mrb[0].mxu0 %v1304
    %v1459 = vpop.f32.mrb[0].mxu0
    %v1460 = vadd.f32 %v1327, %v1459
    %v1461 = vpop.f32.mrb[0].mxu0
    %v1462 = vpop.f32.mrb[0].mxu0
    %v1463 = vadd.f32 %v1327, %v1462
    %v1464 = vpop.f32.mrb[0].mxu0
    %1465 = vmatprep.mubr.bf16.mxu0 0
    %1466 = vmatmul.mubr.bf16.gmra.mrb[0].mxu0 %v1305
    %v1467 = vpop.f32.mrb[0].mxu0
    %v1468 = vadd.f32 %v1327, %v1467
    %v1469 = vpop.f32.mrb[0].mxu0
    %v1470 = vpop.f32.mrb[0].mxu0
    %v1471 = vadd.f32 %v1327, %v1470
    %v1472 = vpop.f32.mrb[0].mxu0
    %1473 = vdwg.mxu0
    %v1474 = vld [vmem:[%s14] sm:$0x1]
    %v1475 = vld [vmem:[%s15] sm:$0x1]
    %v1476 = vmul.f32 %v1412, %v112
    %v1477 = vmul.f32 %v1415, %v113
    %v1478 = vmul.f32 %v1420, %v114
    %v1479 = vmul.f32 %v1423, %v115
    %v1480 = vmul.f32 %v1428, %v116
    %v1481 = vmul.f32 %v1431, %v117
    %v1482 = vmul.f32 %v1436, %v118
    %v1483 = vmul.f32 %v1439, %v119
    %v1484 = vmul.f32 %v1444, %v120
    %v1485 = vmul.f32 %v1447, %v121
    %v1486 = vmul.f32 %v1452, %v122
    %v1487 = vmul.f32 %v1455, %v123
    %v1488 = vmul.f32 %v1460, %v124
    %v1489 = vmul.f32 %v1463, %v125
    %v1490 = vmul.f32 %v1468, %v126
    %v1491 = vmul.f32 %v1471, %v127
    %v1492 = vadd.f32 %v1476, %v1477
    %v1493 = vadd.f32 %v1492, %v1478
    %v1494 = vadd.f32 %v1493, %v1479
    %v1495 = vadd.f32 %v1494, %v1480
    %v1496 = vadd.f32 %v1495, %v1481
    %v1497 = vadd.f32 %v1496, %v1482
    %v1498 = vadd.f32 %v1497, %v1483
    %v1499 = vadd.f32 %v1498, %v1484
    %v1500 = vadd.f32 %v1499, %v1485
    %v1501 = vadd.f32 %v1500, %v1486
    %v1502 = vadd.f32 %v1501, %v1487
    %v1503 = vadd.f32 %v1502, %v1488
    %v1504 = vadd.f32 %v1503, %v1489
    %v1505 = vadd.f32 %v1504, %v1490
    %v1506 = vadd.f32 %v1505, %v1491
    %v1507 = vrot.slane %v1506, 4
    %v1508 = vadd.f32 %v1506, %v1507
    %v1509 = vrot.slane %v1508, 2
    %v1510 = vadd.f32 %v1508, %v1509
    %v1511 = vrot.slane %v1510, 1
    %v1512 = vadd.f32 %v1510, %v1511
    %v1513 = vmul.f32 %v1512, %v568
    %v1514 = vmul.f32 %v1476, %v1412
    %v1515 = vmul.f32 %v1477, %v1415
    %v1516 = vmul.f32 %v1478, %v1420
    %v1517 = vmul.f32 %v1479, %v1423
    %v1518 = vmul.f32 %v1480, %v1428
    %v1519 = vmul.f32 %v1481, %v1431
    %v1520 = vmul.f32 %v1482, %v1436
    %v1521 = vmul.f32 %v1483, %v1439
    %v1522 = vmul.f32 %v1484, %v1444
    %v1523 = vmul.f32 %v1485, %v1447
    %v1524 = vmul.f32 %v1486, %v1452
    %v1525 = vmul.f32 %v1487, %v1455
    %v1526 = vmul.f32 %v1488, %v1460
    %v1527 = vmul.f32 %v1489, %v1463
    %v1528 = vmul.f32 %v1490, %v1468
    %v1529 = vmul.f32 %v1491, %v1471
    %v1530 = vadd.f32 %v1514, %v1515
    %v1531 = vadd.f32 %v1530, %v1516
    %v1532 = vadd.f32 %v1531, %v1517
    %v1533 = vadd.f32 %v1532, %v1518
    %v1534 = vadd.f32 %v1533, %v1519
    %v1535 = vadd.f32 %v1534, %v1520
    %v1536 = vadd.f32 %v1535, %v1521
    %v1537 = vadd.f32 %v1536, %v1522
    %v1538 = vadd.f32 %v1537, %v1523
    %v1539 = vadd.f32 %v1538, %v1524
    %v1540 = vadd.f32 %v1539, %v1525
    %v1541 = vadd.f32 %v1540, %v1526
    %v1542 = vadd.f32 %v1541, %v1527
    %v1543 = vadd.f32 %v1542, %v1528
    %v1544 = vadd.f32 %v1543, %v1529
    %v1545 = vrot.slane %v1544, 4
    %v1546 = vadd.f32 %v1544, %v1545
    %v1547 = vrot.slane %v1546, 2
    %v1548 = vadd.f32 %v1546, %v1547
    %v1549 = vrot.slane %v1548, 1
    %v1550 = vadd.f32 %v1548, %v1549
    %v1551 = vmul.f32 %v1550, %v568
    %v1552 = vmul.f32 %v1513, %v1513
    %v1553 = vsub.f32 %v1551, %v1552
    %v1554 = vmax.f32 %v1553, 0.0
    %v1555 = vsub.f32 %v1412, %v1513
    %v1556 = vsub.f32 %v1415, %v1513
    %v1557 = vsub.f32 %v1420, %v1513
    %v1558 = vsub.f32 %v1423, %v1513
    %v1559 = vsub.f32 %v1428, %v1513
    %v1560 = vsub.f32 %v1431, %v1513
    %v1561 = vsub.f32 %v1436, %v1513
    %v1562 = vsub.f32 %v1439, %v1513
    %v1563 = vsub.f32 %v1444, %v1513
    %v1564 = vsub.f32 %v1447, %v1513
    %v1565 = vsub.f32 %v1452, %v1513
    %v1566 = vsub.f32 %v1455, %v1513
    %v1567 = vsub.f32 %v1460, %v1513
    %v1568 = vsub.f32 %v1463, %v1513
    %v1569 = vsub.f32 %v1468, %v1513
    %v1570 = vsub.f32 %v1471, %v1513
    %v1571 = vadd.f32 %v1554, 1e-05
    %v1572 = vrsqrt.pop %v1571
    %v1573 = vmul.f32 %v1555, %v1572
    %v1574 = vmul.f32 %v1556, %v1572
    %v1575 = vmul.f32 %v1557, %v1572
    %v1576 = vmul.f32 %v1558, %v1572
    %v1577 = vmul.f32 %v1559, %v1572
    %v1578 = vmul.f32 %v1560, %v1572
    %v1579 = vmul.f32 %v1561, %v1572
    %v1580 = vmul.f32 %v1562, %v1572
    %v1581 = vmul.f32 %v1563, %v1572
    %v1582 = vmul.f32 %v1564, %v1572
    %v1583 = vmul.f32 %v1565, %v1572
    %v1584 = vmul.f32 %v1566, %v1572
    %v1585 = vmul.f32 %v1567, %v1572
    %v1586 = vmul.f32 %v1568, %v1572
    %v1587 = vmul.f32 %v1569, %v1572
    %v1588 = vmul.f32 %v1570, %v1572
    %v1590 = vlaneseq
    %v1591 = vshrl.u32 %v1590, 7
    %v1592 = vsub.s32 0, %v1591
    %v1593 = vrot.slane %v1474, %v1592
    %v1595 = vmul.f32 %v1573, %v1593
    %v1596 = vmul.f32 %v1574, %v1593
    %v1597 = vmul.f32 %v1575, %v1593
    %v1598 = vmul.f32 %v1576, %v1593
    %v1599 = vmul.f32 %v1577, %v1593
    %v1600 = vmul.f32 %v1578, %v1593
    %v1601 = vmul.f32 %v1579, %v1593
    %v1602 = vmul.f32 %v1580, %v1593
    %v1603 = vmul.f32 %v1581, %v1593
    %v1604 = vmul.f32 %v1582, %v1593
    %v1605 = vmul.f32 %v1583, %v1593
    %v1606 = vmul.f32 %v1584, %v1593
    %v1607 = vmul.f32 %v1585, %v1593
    %v1608 = vmul.f32 %v1586, %v1593
    %v1609 = vmul.f32 %v1587, %v1593
    %v1610 = vmul.f32 %v1588, %v1593
    %v1612 = vlaneseq
    %v1613 = vshrl.u32 %v1612, 7
    %v1614 = vsub.s32 0, %v1613
    %v1615 = vrot.slane %v1475, %v1614
    %v1617 = vadd.f32 %v1595, %v1615
    %v1618 = vadd.f32 %v1596, %v1615
    %v1619 = vadd.f32 %v1597, %v1615
    %v1620 = vadd.f32 %v1598, %v1615
    %v1621 = vadd.f32 %v1599, %v1615
    %v1622 = vadd.f32 %v1600, %v1615
    %v1623 = vadd.f32 %v1601, %v1615
    %v1624 = vadd.f32 %v1602, %v1615
    %v1625 = vadd.f32 %v1603, %v1615
    %v1626 = vadd.f32 %v1604, %v1615
    %v1627 = vadd.f32 %v1605, %v1615
    %v1628 = vadd.f32 %v1606, %v1615
    %v1629 = vadd.f32 %v1607, %v1615
    %v1630 = vadd.f32 %v1608, %v1615
    %v1631 = vadd.f32 %v1609, %v1615
    %v1632 = vadd.f32 %v1610, %v1615
    %v1633 = vmax.f32 %v1617, 0.0
    %v1634 = vmax.f32 %v1618, 0.0
    %v1635 = vmax.f32 %v1619, 0.0
    %v1636 = vmax.f32 %v1620, 0.0
    %v1637 = vmax.f32 %v1621, 0.0
    %v1638 = vmax.f32 %v1622, 0.0
    %v1639 = vmax.f32 %v1623, 0.0
    %v1640 = vmax.f32 %v1624, 0.0
    %v1641 = vmax.f32 %v1625, 0.0
    %v1642 = vmax.f32 %v1626, 0.0
    %v1643 = vmax.f32 %v1627, 0.0
    %v1644 = vmax.f32 %v1628, 0.0
    %v1645 = vmax.f32 %v1629, 0.0
    %v1646 = vmax.f32 %v1630, 0.0
    %v1647 = vmax.f32 %v1631, 0.0
    %v1648 = vmax.f32 %v1632, 0.0
    %v1649 = vmul.f32 %v1633, %v112
    %v1650 = vmul.f32 %v1634, %v113
    %v1651 = vmul.f32 %v1635, %v114
    %v1652 = vmul.f32 %v1636, %v115
    %v1653 = vmul.f32 %v1637, %v116
    %v1654 = vmul.f32 %v1638, %v117
    %v1655 = vmul.f32 %v1639, %v118
    %v1656 = vmul.f32 %v1640, %v119
    %v1657 = vmul.f32 %v1641, %v120
    %v1658 = vmul.f32 %v1642, %v121
    %v1659 = vmul.f32 %v1643, %v122
    %v1660 = vmul.f32 %v1644, %v123
    %v1661 = vmul.f32 %v1645, %v124
    %v1662 = vmul.f32 %v1646, %v125
    %v1663 = vmul.f32 %v1647, %v126
    %v1664 = vmul.f32 %v1648, %v127
    %v1665 = vld [vmem:[%s16] sm:$0x1]
    %v1666 = vpack.c.bf16 %v1650, %v1649
    %v1667 = vpack.c.bf16 %v1652, %v1651
    %v1668 = vpack.c.bf16 %v1654, %v1653
    %v1669 = vpack.c.bf16 %v1656, %v1655
    %v1670 = vpack.c.bf16 %v1658, %v1657
    %v1671 = vpack.c.bf16 %v1660, %v1659
    %v1672 = vpack.c.bf16 %v1662, %v1661
    %v1673 = vpack.c.bf16 %v1664, %v1663
    %1674 = vmatprep.subr.bf16.mxu0 0
    %1675 = vmatpush1.bf16.msra.mxu0 %v1666
    %1676 = vmatprep.subr.bf16.mxu0 0
    %1677 = vmatpush1.bf16.msra.mxu0 %v1667
    %1678 = vmatprep.subr.bf16.mxu0 0
    %1679 = vmatpush1.bf16.msra.mxu0 %v1668
    %1680 = vmatprep.subr.bf16.mxu0 0
    %1681 = vmatpush1.bf16.msra.mxu0 %v1669
    %1682 = vmatprep.subr.bf16.mxu0 0
    %1683 = vmatpush1.bf16.msra.mxu0 %v1670
    %1684 = vmatprep.subr.bf16.mxu0 0
    %1685 = vmatpush1.bf16.msra.mxu0 %v1671
    %1686 = vmatprep.subr.bf16.mxu0 0
    %1687 = vmatpush1.bf16.msra.mxu0 %v1672
    %1688 = vmatprep.subr.bf16.mxu0 0
    %1689 = vmatpush1.bf16.msra.mxu0 %v1673
    %1690 = vmatprep.subr.bf16.mxu0 0
    %1691 = vmatpush1.bf16.msra.mxu0 0
    %1692 = vmatprep.subr.bf16.mxu0 0
    %1693 = vmatpush1.bf16.msra.mxu0 0
    %1694 = vmatprep.subr.bf16.mxu0 0
    %1695 = vmatpush1.bf16.msra.mxu0 0
    %1696 = vmatprep.subr.bf16.mxu0 0
    %1697 = vmatpush1.bf16.msra.mxu0 0
    %1698 = vmatprep.subr.bf16.mxu0 0
    %1699 = vmatpush1.bf16.msra.mxu0 0
    %1700 = vmatprep.subr.bf16.mxu0 0
    %1701 = vmatpush1.bf16.msra.mxu0 0
    %1702 = vmatprep.subr.bf16.mxu0 0
    %1703 = vmatpush1.bf16.msra.mxu0 0
    %1704 = vmatprep.subr.bf16.mxu0 0
    %1705 = vmatpush1.bf16.msra.mxu0 0
    %1706 = vmatprep.mubr.bf16.mxu0 0
    %1707 = vmatmul.mubr.bf16.gmra.mrb[0].mxu0 %v1665
    %v1708 = vpop.f32.mrb[0].mxu0
    %v1709 = vadd.f32 0.0, %v1708
    %v1710 = vpop.f32.mrb[0].mxu0
    %v1711 = vpop.f32.mrb[0].mxu0
    %v1712 = vpop.f32.mrb[0].mxu0
    %1713 = vdwg.mxu0
    %1714 = vst [vmem:[#allocation4] sm:$0x3] %v1709
    // Predicated region
    $region70: #{enc_fused.1} parent=1 // pred_check
      _
    $region71: #{enc_fused.1} parent=1 // pred_check_branch
      %1716 = sbr.rel (0) target = $region73
    $region72: #{enc_fused.1} parent=1 // pred_region
      %s1718 = ssub.s32 32, 32
      %1719 = vsyncadd [#allocation5], %s1718
      %s1721 = sshll.u32 [#allocation4], 4
      %s1722 = int_to_ptr.vmem [resolvable:$true] %s1721
      %1724 = dma.vmem_to_hbm [thread:$0]  %s1722, 32, %s17, [#allocation5]
    $region73: #{enc_fused.1} parent=1 // pred_fallthru
      _
    // Predicated region
    $region74: #{enc_fused.1} parent=1 // pred_check
      _
    $region75: #{enc_fused.1} parent=1 // pred_check_branch
      %1726 = sbr.rel (0) target = $region77
    $region76: #{enc_fused.1} parent=1 // pred_region
      %1727 = dma.done [#allocation5], 32
    $region77: #{enc_fused.1} parent=1 // pred_fallthru
      _
    %1728 = vsyncpa [#allocation5], 1

</llo_original>
